<compile_context>
chip_gen: v7x
topology: tpu7x:2x2x1
jax: 0.10.0
libtpu: 0.0.40
codegen_flags: <defaults>
</compile_context>

<pallas_src>
import functools

import numpy as np
import jax
import jax.numpy as jnp
from jax import lax
from jax.experimental import pallas as pl
from jax.experimental.pallas import tpu as pltpu

EPS = 1e-5


# ---------------------------------------------------------------------------
# Fused Bottleneck kernel: `nb` images per grid step, all lane-dense.
# ---------------------------------------------------------------------------
def _bottleneck_kernel(x_ref, w1_ref, ws_ref, wt_ref, w3s_ref, w3t_ref,
                       sb1_ref, sb2_ref, sb3_ref, m_ref, o_ref,
                       *, H, W, planes, t_size, nb):
    half = planes // 2
    HW = H * W
    L = nb * HW

    # ---- stack the nb images of this block along the lane (spatial) axis ---
    if nb == 1:
        x_w = x_ref[0]                                            # (Cin, HW) f32
    else:
        x_w = jnp.concatenate([x_ref[i] for i in range(nb)], axis=-1)  # (Cin, L)

    # ---- conv1 (1x1, channel-major) + bn1 + relu: bf16 MXU operands, f32 acc
    out1 = jnp.dot(w1_ref[...], x_w.astype(jnp.bfloat16),
                   preferred_element_type=jnp.float32)            # (planes, L)
    out1 = jnp.maximum(out1 * sb1_ref[:, 0:1] + sb1_ref[:, 1:2], 0.0)

    masks = m_ref[...]                                            # (18, L) 0/1 f32

    # ---- per-branch im2col via lane rolls + boundary masks ------------------
    # Register accumulation only; 8-row f32 slabs concat tile-aligned, then a
    # single bf16 cast feeds one stacked-K (= 9*planes) matmul per branch.
    def branch_cols(dil, mask_base):
        slabs = []
        for kh in range(3):
            for kw in range(3):
                dh = (kh - 1) * dil
                dw = (kw - 1) * dil
                off = dh * W + dw
                rolled = out1 if off == 0 else pltpu.roll(out1, (-off) % L, 1)
                r = mask_base + kh * 3 + kw
                slabs.append(rolled * masks[r:r + 1, :])
        return jnp.concatenate(slabs, axis=0).astype(jnp.bfloat16)  # (9*planes, L)

    cols_s = branch_cols(t_size, 0)   # dilated (spatial) branch
    cols_t = branch_cols(1, 9)        # dilation-1 (temporal) branch

    s_out = jnp.dot(ws_ref[...], cols_s, preferred_element_type=jnp.float32)  # (half, L)
    t_out = jnp.dot(wt_ref[...], cols_t, preferred_element_type=jnp.float32)  # (half, L)

    # ---- bn2 + relu per branch (the channel concat is never materialized) ---
    y_s = jnp.maximum(s_out * sb2_ref[0:half, 0:1] + sb2_ref[0:half, 1:2], 0.0)
    y_t = jnp.maximum(t_out * sb2_ref[half:planes, 0:1] + sb2_ref[half:planes, 1:2], 0.0)

    # ---- conv3 (1x1, split per branch) + bn3 + residual + relu --------------
    z = (jnp.dot(w3s_ref[...], y_s.astype(jnp.bfloat16),
                 preferred_element_type=jnp.float32)
         + jnp.dot(w3t_ref[...], y_t.astype(jnp.bfloat16),
                   preferred_element_type=jnp.float32))           # (Cout, L)
    z = jnp.maximum(z * sb3_ref[:, 0:1] + sb3_ref[:, 1:2] + x_w, 0.0)

    # lane-dense (Cout, HW) stores, per image of the block
    for i in range(nb):
        o_ref[i] = z[:, i * HW:(i + 1) * HW]


# ---------------------------------------------------------------------------
# Parameter / wrapper helpers
# ---------------------------------------------------------------------------
def fold_bn(gamma, beta, mean, var):
    scale = gamma / jnp.sqrt(var + EPS)
    bias = beta - mean * scale
    return scale, bias


def make_params(key, inplanes, planes):
    ks = jax.random.split(key, 16)
    p = {}
    p["w1"] = 0.1 * jax.random.normal(ks[0], (inplanes, planes), jnp.float32)
    p["ws"] = 0.1 * jax.random.normal(ks[1], (3, 3, planes, planes // 2), jnp.float32)
    p["wt"] = 0.1 * jax.random.normal(ks[2], (3, 3, planes, planes // 2), jnp.float32)
    p["w3"] = 0.1 * jax.random.normal(ks[3], (planes, planes * 4), jnp.float32)

    def bn_params(k, c):
        k1, k2, k3, k4 = jax.random.split(k, 4)
        gamma = 1.0 + 0.1 * jax.random.normal(k1, (c,), jnp.float32)
        beta = 0.1 * jax.random.normal(k2, (c,), jnp.float32)
        mean = 0.1 * jax.random.normal(k3, (c,), jnp.float32)
        var = jax.random.uniform(k4, (c,), jnp.float32, 0.5, 1.5)
        return gamma, beta, mean, var

    p["bn1"] = bn_params(ks[4], planes)
    p["bn2"] = bn_params(ks[5], planes)
    p["bn3"] = bn_params(ks[6], planes * 4)
    return p


def _pick_block_n(n):
    # Prefer >= 2 grid steps (v7x has 2 TensorCores) while batching several
    # images per step to amortize per-step overhead.
    for cand in range(min(8, n), 0, -1):
        if n % cand == 0 and n // cand >= 2:
            return cand
    return n


def _tap_masks(H, W, nb, dils):
    """(len(dils)*9, nb*H*W) 0/1 boundary masks, periodic per image."""
    hw = np.arange(H * W)
    h, w = hw // W, hw % W
    rows = []
    for d in dils:
        for kh in range(3):
            for kw in range(3):
                dh, dw = (kh - 1) * d, (kw - 1) * d
                valid = ((h + dh >= 0) & (h + dh < H) &
                         (w + dw >= 0) & (w + dw < W))
                rows.append(np.tile(valid.astype(np.float32), nb))
    return jnp.asarray(np.stack(rows))


# ---------------------------------------------------------------------------
# Forward wrapper
# ---------------------------------------------------------------------------
def bottleneck_forward(x_nchw, params, *, planes, t_size, block_n=None):
    N, Cin, H, W = x_nchw.shape
    Cout = planes * 4
    assert Cin == Cout, "stride=1 / downsample=None requires inplanes == planes*4"
    assert planes % 2 == 0, "dual-branch split requires even planes"
    assert t_size >= 1
    # TODO(synk): stride > 1 and a non-None `downsample` branch not implemented.
    HW = H * W
    half = planes // 2

    nb = _pick_block_n(N) if block_n is None else block_n
    assert N % nb == 0
    L = nb * HW

    # Free reshape: NCHW -> (N, C, H*W); channel-major, no HBM transpose.
    x_flat = x_nchw.reshape(N, Cin, HW).astype(jnp.float32)

    s1, b1 = fold_bn(*params["bn1"])
    s2, b2 = fold_bn(*params["bn2"])
    s3, b3 = fold_bn(*params["bn3"])
    sb1 = jnp.stack([s1, b1], axis=1)            # (planes, 2)
    sb2 = jnp.stack([s2, b2], axis=1)            # (planes, 2)
    sb3 = jnp.stack([s3, b3], axis=1)            # (Cout,   2)

    # bf16 MXU operands, channel-major orientation, im2col weight layout.
    w1t = params["w1"].T.astype(jnp.bfloat16)                                   # (planes, Cin)
    ws_mat = params["ws"].transpose(3, 0, 1, 2).reshape(half, 9 * planes).astype(jnp.bfloat16)
    wt_mat = params["wt"].transpose(3, 0, 1, 2).reshape(half, 9 * planes).astype(jnp.bfloat16)
    w3t = params["w3"].T                                                         # (Cout, planes)
    w3s_mat = w3t[:, :half].astype(jnp.bfloat16)                                 # (Cout, half)
    w3t_mat = w3t[:, half:].astype(jnp.bfloat16)                                 # (Cout, half)

    masks = _tap_masks(H, W, nb, (t_size, 1))    # (18, L) f32

    kernel = functools.partial(_bottleneck_kernel, H=H, W=W, planes=planes,
                               t_size=t_size, nb=nb)

    out = pl.pallas_call(
        kernel,
        out_shape=jax.ShapeDtypeStruct((N, Cout, HW), jnp.float32),
        grid=(N // nb,),
        in_specs=[
            pl.BlockSpec((nb, Cin, HW), lambda n: (n, 0, 0)),       # x (channel-major)
            pl.BlockSpec((planes, Cin), lambda n: (0, 0)),          # w1^T
            pl.BlockSpec((half, 9 * planes), lambda n: (0, 0)),     # s-branch im2col W
            pl.BlockSpec((half, 9 * planes), lambda n: (0, 0)),     # t-branch im2col W
            pl.BlockSpec((Cout, half), lambda n: (0, 0)),           # conv3 (s half)
            pl.BlockSpec((Cout, half), lambda n: (0, 0)),           # conv3 (t half)
            pl.BlockSpec((planes, 2), lambda n: (0, 0)),            # bn1 scale|bias
            pl.BlockSpec((planes, 2), lambda n: (0, 0)),            # bn2 scale|bias
            pl.BlockSpec((Cout, 2), lambda n: (0, 0)),              # bn3 scale|bias
            pl.BlockSpec((18, L), lambda n: (0, 0)),                # tap boundary masks
        ],
        out_specs=pl.BlockSpec((nb, Cout, HW), lambda n: (n, 0, 0)),
        compiler_params=pltpu.CompilerParams(dimension_semantics=("parallel",)),
    )(x_flat, w1t, ws_mat, wt_mat, w3s_mat, w3t_mat, sb1, sb2, sb3, masks)

    return out.reshape(N, Cout, H, W)   # free reshape back to NCHW


# ---------------------------------------------------------------------------
# Pure-JAX reference (PyTorch semantics; same bf16-rounded weights as kernel).
# ---------------------------------------------------------------------------
def reference_forward(x_nchw, params, *, planes, t_size):
    def r(w):  # match the kernel's bf16 weight rounding
        return w.astype(jnp.bfloat16).astype(jnp.float32)

    x = jnp.transpose(x_nchw, (0, 2, 3, 1)).astype(jnp.float32)
    s1, b1 = fold_bn(*params["bn1"])
    s2, b2 = fold_bn(*params["bn2"])
    s3, b3 = fold_bn(*params["bn3"])
    o = jnp.einsum("nhwc,cf->nhwf", x, r(params["w1"]))
    o = jnp.maximum(o * s1 + b1, 0.0)
    dn = ("NHWC", "HWIO", "NHWC")
    br_s = lax.conv_general_dilated(o, r(params["ws"]), (1, 1), [(t_size, t_size)] * 2,
                                    rhs_dilation=(t_size, t_size), dimension_numbers=dn)
    br_t = lax.conv_general_dilated(o, r(params["wt"]), (1, 1), [(1, 1)] * 2,
                                    rhs_dilation=(1, 1), dimension_numbers=dn)
    o = jnp.concatenate([br_s, br_t], axis=-1)
    o = jnp.maximum(o * s2 + b2, 0.0)
    o = jnp.einsum("nhwc,cf->nhwf", o, r(params["w3"]))
    o = jnp.maximum(o * s3 + b3 + x, 0.0)
    return jnp.transpose(o, (0, 3, 1, 2))


if __name__ == "__main__":
    # Shape-consistent config: inplanes == planes*4, stride=1, downsample=None.
    N, H, W = 4, 16, 16
    planes = 8
    inplanes = planes * 4   # 32
    t_size = 4

    key = jax.random.PRNGKey(0)
    kx, kp = jax.random.split(key)
    x = jax.random.normal(kx, (N, inplanes, H, W), jnp.float32)
    params = make_params(kp, inplanes, planes)

    fwd = jax.jit(functools.partial(bottleneck_forward, planes=planes, t_size=t_size))
    out = jax.block_until_ready(fwd(x, params))

    ref = jax.block_until_ready(
        reference_forward(x, params, planes=planes, t_size=t_size))

    assert out.shape == (N, planes * 4, H, W)
    # Tolerance accounts for bf16 matmul operands / activations (f32 accumulate).
    if not jnp.allclose(out, ref, atol=2e-2, rtol=2e-2):
        diff = jnp.max(jnp.abs(out - ref))
        raise AssertionError(f"Pallas Bottleneck mismatch vs JAX reference (max |diff|={diff})")

    print("KERNEL_OK")
</pallas_src>

<mosaic_0001>
module attributes {stable_mosaic.version = 11 : i64} {
  func.func @_bottleneck_kernel(%arg0: i32, %arg1: memref<2x32x256xf32, #tpu.memory_space<vmem>>, %arg2: memref<8x32xbf16, #tpu.memory_space<vmem>>, %arg3: memref<4x72xbf16, #tpu.memory_space<vmem>>, %arg4: memref<4x72xbf16, #tpu.memory_space<vmem>>, %arg5: memref<32x4xbf16, #tpu.memory_space<vmem>>, %arg6: memref<32x4xbf16, #tpu.memory_space<vmem>>, %arg7: memref<8x2xf32, #tpu.memory_space<vmem>>, %arg8: memref<8x2xf32, #tpu.memory_space<vmem>>, %arg9: memref<32x2xf32, #tpu.memory_space<vmem>>, %arg10: memref<18x512xf32, #tpu.memory_space<vmem>>, %arg11: memref<2x32x256xf32, #tpu.memory_space<vmem>>) attributes {dimension_semantics = [#tpu.dimension_semantics<parallel>], iteration_bounds = array<i64: 2>, scalar_prefetch = 0 : i64, scratch_operands = 0 : i64, tpu.core_type = #tpu.core_type<tc>, window_params = [{transform_indices = @transform_0, window_bounds = array<i64: 2, 32, 256>}, {pipeline_mode = #tpu.pipeline_mode<synchronous>, transform_indices = @transform_1, window_bounds = array<i64: 8, 32>}, {pipeline_mode = #tpu.pipeline_mode<synchronous>, transform_indices = @transform_2, window_bounds = array<i64: 4, 72>}, {pipeline_mode = #tpu.pipeline_mode<synchronous>, transform_indices = @transform_3, window_bounds = array<i64: 4, 72>}, {pipeline_mode = #tpu.pipeline_mode<synchronous>, transform_indices = @transform_4, window_bounds = array<i64: 32, 4>}, {pipeline_mode = #tpu.pipeline_mode<synchronous>, transform_indices = @transform_5, window_bounds = array<i64: 32, 4>}, {pipeline_mode = #tpu.pipeline_mode<synchronous>, transform_indices = @transform_6, window_bounds = array<i64: 8, 2>}, {pipeline_mode = #tpu.pipeline_mode<synchronous>, transform_indices = @transform_7, window_bounds = array<i64: 8, 2>}, {pipeline_mode = #tpu.pipeline_mode<synchronous>, transform_indices = @transform_8, window_bounds = array<i64: 32, 2>}, {pipeline_mode = #tpu.pipeline_mode<synchronous>, transform_indices = @transform_9, window_bounds = array<i64: 18, 512>}, {transform_indices = @transform_10, window_bounds = array<i64: 2, 32, 256>}]} {
    %c0 = arith.constant 0 : index
    %c0_0 = arith.constant 0 : index
    %c0_1 = arith.constant 0 : index
    %0 = vector.load %arg1[%c0, %c0_0, %c0_1] : memref<2x32x256xf32, #tpu.memory_space<vmem>>, vector<1x32x256xf32>
    %1 = vector.shape_cast %0 : vector<1x32x256xf32> to vector<32x256xf32>
    %c1 = arith.constant 1 : index
    %c0_2 = arith.constant 0 : index
    %c0_3 = arith.constant 0 : index
    %2 = vector.load %arg1[%c1, %c0_2, %c0_3] : memref<2x32x256xf32, #tpu.memory_space<vmem>>, vector<1x32x256xf32>
    %3 = vector.shape_cast %2 : vector<1x32x256xf32> to vector<32x256xf32>
    %4 = tpu.concatenate %1, %3 in 1 : vector<32x256xf32>, vector<32x256xf32> -> vector<32x512xf32>
    %c0_4 = arith.constant 0 : index
    %c0_5 = arith.constant 0 : index
    %5 = vector.load %arg2[%c0_4, %c0_5] : memref<8x32xbf16, #tpu.memory_space<vmem>>, vector<8x32xbf16>
    %6 = arith.truncf %4 : vector<32x512xf32> to vector<32x512xbf16>
    %cst = arith.constant dense<0.000000e+00> : vector<8x512xf32>
    %7 = tpu.matmul %5, %6, %cst {dimension_numbers = #tpu.dot_dimension_numbers<[1], [0], [0], [1], [0, 0, 1, 1], [], []>} : vector<8x32xbf16>, vector<32x512xbf16>, vector<8x512xf32> -> vector<8x512xf32>
    %c0_6 = arith.constant 0 : index
    %c0_7 = arith.constant 0 : index
    %8 = vector.load %arg7[%c0_6, %c0_7] : memref<8x2xf32, #tpu.memory_space<vmem>>, vector<8x1xf32>
    %9 = vector.broadcast %8 : vector<8x1xf32> to vector<8x512xf32>
    %10 = arith.mulf %7, %9 : vector<8x512xf32>
    %c0_8 = arith.constant 0 : index
    %c1_9 = arith.constant 1 : index
    %11 = vector.load %arg7[%c0_8, %c1_9] : memref<8x2xf32, #tpu.memory_space<vmem>>, vector<8x1xf32>
    %12 = vector.broadcast %11 : vector<8x1xf32> to vector<8x512xf32>
    %13 = arith.addf %10, %12 : vector<8x512xf32>
    %cst_10 = arith.constant 0.000000e+00 : f32
    %14 = vector.broadcast %cst_10 : f32 to vector<8x512xf32>
    %15 = arith.maximumf %13, %14 : vector<8x512xf32>
    %c0_11 = arith.constant 0 : index
    %c0_12 = arith.constant 0 : index
    %16 = vector.load %arg10[%c0_11, %c0_12] : memref<18x512xf32, #tpu.memory_space<vmem>>, vector<18x512xf32>
    %c68_i32 = arith.constant 68 : i32
    %17 = tpu.dynamic_rotate %15 by %c68_i32 dim 1 : vector<8x512xf32>, i32 -> vector<8x512xf32>
    %18 = vector.extract_strided_slice %16 {offsets = [0, 0], sizes = [1, 512], strides = [1, 1]} : vector<18x512xf32> to vector<1x512xf32>
    %19 = vector.broadcast %18 : vector<1x512xf32> to vector<8x512xf32>
    %20 = arith.mulf %17, %19 : vector<8x512xf32>
    %c64_i32 = arith.constant 64 : i32
    %21 = tpu.dynamic_rotate %15 by %c64_i32 dim 1 : vector<8x512xf32>, i32 -> vector<8x512xf32>
    %22 = vector.extract_strided_slice %16 {offsets = [1, 0], sizes = [1, 512], strides = [1, 1]} : vector<18x512xf32> to vector<1x512xf32>
    %23 = vector.broadcast %22 : vector<1x512xf32> to vector<8x512xf32>
    %24 = arith.mulf %21, %23 : vector<8x512xf32>
    %c60_i32 = arith.constant 60 : i32
    %25 = tpu.dynamic_rotate %15 by %c60_i32 dim 1 : vector<8x512xf32>, i32 -> vector<8x512xf32>
    %26 = vector.extract_strided_slice %16 {offsets = [2, 0], sizes = [1, 512], strides = [1, 1]} : vector<18x512xf32> to vector<1x512xf32>
    %27 = vector.broadcast %26 : vector<1x512xf32> to vector<8x512xf32>
    %28 = arith.mulf %25, %27 : vector<8x512xf32>
    %c4_i32 = arith.constant 4 : i32
    %29 = tpu.dynamic_rotate %15 by %c4_i32 dim 1 : vector<8x512xf32>, i32 -> vector<8x512xf32>
    %30 = vector.extract_strided_slice %16 {offsets = [3, 0], sizes = [1, 512], strides = [1, 1]} : vector<18x512xf32> to vector<1x512xf32>
    %31 = vector.broadcast %30 : vector<1x512xf32> to vector<8x512xf32>
    %32 = arith.mulf %29, %31 : vector<8x512xf32>
    %33 = vector.extract_strided_slice %16 {offsets = [4, 0], sizes = [1, 512], strides = [1, 1]} : vector<18x512xf32> to vector<1x512xf32>
    %34 = vector.broadcast %33 : vector<1x512xf32> to vector<8x512xf32>
    %35 = arith.mulf %15, %34 : vector<8x512xf32>
    %c508_i32 = arith.constant 508 : i32
    %36 = tpu.dynamic_rotate %15 by %c508_i32 dim 1 : vector<8x512xf32>, i32 -> vector<8x512xf32>
    %37 = vector.extract_strided_slice %16 {offsets = [5, 0], sizes = [1, 512], strides = [1, 1]} : vector<18x512xf32> to vector<1x512xf32>
    %38 = vector.broadcast %37 : vector<1x512xf32> to vector<8x512xf32>
    %39 = arith.mulf %36, %38 : vector<8x512xf32>
    %c452_i32 = arith.constant 452 : i32
    %40 = tpu.dynamic_rotate %15 by %c452_i32 dim 1 : vector<8x512xf32>, i32 -> vector<8x512xf32>
    %41 = vector.extract_strided_slice %16 {offsets = [6, 0], sizes = [1, 512], strides = [1, 1]} : vector<18x512xf32> to vector<1x512xf32>
    %42 = vector.broadcast %41 : vector<1x512xf32> to vector<8x512xf32>
    %43 = arith.mulf %40, %42 : vector<8x512xf32>
    %c448_i32 = arith.constant 448 : i32
    %44 = tpu.dynamic_rotate %15 by %c448_i32 dim 1 : vector<8x512xf32>, i32 -> vector<8x512xf32>
    %45 = vector.extract_strided_slice %16 {offsets = [7, 0], sizes = [1, 512], strides = [1, 1]} : vector<18x512xf32> to vector<1x512xf32>
    %46 = vector.broadcast %45 : vector<1x512xf32> to vector<8x512xf32>
    %47 = arith.mulf %44, %46 : vector<8x512xf32>
    %c444_i32 = arith.constant 444 : i32
    %48 = tpu.dynamic_rotate %15 by %c444_i32 dim 1 : vector<8x512xf32>, i32 -> vector<8x512xf32>
    %49 = vector.extract_strided_slice %16 {offsets = [8, 0], sizes = [1, 512], strides = [1, 1]} : vector<18x512xf32> to vector<1x512xf32>
    %50 = vector.broadcast %49 : vector<1x512xf32> to vector<8x512xf32>
    %51 = arith.mulf %48, %50 : vector<8x512xf32>
    %52 = tpu.concatenate %20, %24, %28, %32, %35, %39, %43, %47, %51 in 0 : vector<8x512xf32>, vector<8x512xf32>, vector<8x512xf32>, vector<8x512xf32>, vector<8x512xf32>, vector<8x512xf32>, vector<8x512xf32>, vector<8x512xf32>, vector<8x512xf32> -> vector<72x512xf32>
    %53 = arith.truncf %52 : vector<72x512xf32> to vector<72x512xbf16>
    %c17_i32 = arith.constant 17 : i32
    %54 = tpu.dynamic_rotate %15 by %c17_i32 dim 1 : vector<8x512xf32>, i32 -> vector<8x512xf32>
    %55 = vector.extract_strided_slice %16 {offsets = [9, 0], sizes = [1, 512], strides = [1, 1]} : vector<18x512xf32> to vector<1x512xf32>
    %56 = vector.broadcast %55 : vector<1x512xf32> to vector<8x512xf32>
    %57 = arith.mulf %54, %56 : vector<8x512xf32>
    %c16_i32 = arith.constant 16 : i32
    %58 = tpu.dynamic_rotate %15 by %c16_i32 dim 1 : vector<8x512xf32>, i32 -> vector<8x512xf32>
    %59 = vector.extract_strided_slice %16 {offsets = [10, 0], sizes = [1, 512], strides = [1, 1]} : vector<18x512xf32> to vector<1x512xf32>
    %60 = vector.broadcast %59 : vector<1x512xf32> to vector<8x512xf32>
    %61 = arith.mulf %58, %60 : vector<8x512xf32>
    %c15_i32 = arith.constant 15 : i32
    %62 = tpu.dynamic_rotate %15 by %c15_i32 dim 1 : vector<8x512xf32>, i32 -> vector<8x512xf32>
    %63 = vector.extract_strided_slice %16 {offsets = [11, 0], sizes = [1, 512], strides = [1, 1]} : vector<18x512xf32> to vector<1x512xf32>
    %64 = vector.broadcast %63 : vector<1x512xf32> to vector<8x512xf32>
    %65 = arith.mulf %62, %64 : vector<8x512xf32>
    %c1_i32 = arith.constant 1 : i32
    %66 = tpu.dynamic_rotate %15 by %c1_i32 dim 1 : vector<8x512xf32>, i32 -> vector<8x512xf32>
    %67 = vector.extract_strided_slice %16 {offsets = [12, 0], sizes = [1, 512], strides = [1, 1]} : vector<18x512xf32> to vector<1x512xf32>
    %68 = vector.broadcast %67 : vector<1x512xf32> to vector<8x512xf32>
    %69 = arith.mulf %66, %68 : vector<8x512xf32>
    %70 = vector.extract_strided_slice %16 {offsets = [13, 0], sizes = [1, 512], strides = [1, 1]} : vector<18x512xf32> to vector<1x512xf32>
    %71 = vector.broadcast %70 : vector<1x512xf32> to vector<8x512xf32>
    %72 = arith.mulf %15, %71 : vector<8x512xf32>
    %c511_i32 = arith.constant 511 : i32
    %73 = tpu.dynamic_rotate %15 by %c511_i32 dim 1 : vector<8x512xf32>, i32 -> vector<8x512xf32>
    %74 = vector.extract_strided_slice %16 {offsets = [14, 0], sizes = [1, 512], strides = [1, 1]} : vector<18x512xf32> to vector<1x512xf32>
    %75 = vector.broadcast %74 : vector<1x512xf32> to vector<8x512xf32>
    %76 = arith.mulf %73, %75 : vector<8x512xf32>
    %c497_i32 = arith.constant 497 : i32
    %77 = tpu.dynamic_rotate %15 by %c497_i32 dim 1 : vector<8x512xf32>, i32 -> vector<8x512xf32>
    %78 = vector.extract_strided_slice %16 {offsets = [15, 0], sizes = [1, 512], strides = [1, 1]} : vector<18x512xf32> to vector<1x512xf32>
    %79 = vector.broadcast %78 : vector<1x512xf32> to vector<8x512xf32>
    %80 = arith.mulf %77, %79 : vector<8x512xf32>
    %c496_i32 = arith.constant 496 : i32
    %81 = tpu.dynamic_rotate %15 by %c496_i32 dim 1 : vector<8x512xf32>, i32 -> vector<8x512xf32>
    %82 = vector.extract_strided_slice %16 {offsets = [16, 0], sizes = [1, 512], strides = [1, 1]} : vector<18x512xf32> to vector<1x512xf32>
    %83 = vector.broadcast %82 : vector<1x512xf32> to vector<8x512xf32>
    %84 = arith.mulf %81, %83 : vector<8x512xf32>
    %c495_i32 = arith.constant 495 : i32
    %85 = tpu.dynamic_rotate %15 by %c495_i32 dim 1 : vector<8x512xf32>, i32 -> vector<8x512xf32>
    %86 = vector.extract_strided_slice %16 {offsets = [17, 0], sizes = [1, 512], strides = [1, 1]} : vector<18x512xf32> to vector<1x512xf32>
    %87 = vector.broadcast %86 : vector<1x512xf32> to vector<8x512xf32>
    %88 = arith.mulf %85, %87 : vector<8x512xf32>
    %89 = tpu.concatenate %57, %61, %65, %69, %72, %76, %80, %84, %88 in 0 : vector<8x512xf32>, vector<8x512xf32>, vector<8x512xf32>, vector<8x512xf32>, vector<8x512xf32>, vector<8x512xf32>, vector<8x512xf32>, vector<8x512xf32>, vector<8x512xf32> -> vector<72x512xf32>
    %90 = arith.truncf %89 : vector<72x512xf32> to vector<72x512xbf16>
    %c0_13 = arith.constant 0 : index
    %c0_14 = arith.constant 0 : index
    %91 = vector.load %arg3[%c0_13, %c0_14] : memref<4x72xbf16, #tpu.memory_space<vmem>>, vector<4x72xbf16>
    %cst_15 = arith.constant dense<0.000000e+00> : vector<4x512xf32>
    %92 = tpu.matmul %91, %53, %cst_15 {dimension_numbers = #tpu.dot_dimension_numbers<[1], [0], [0], [1], [0, 0, 1, 1], [], []>} : vector<4x72xbf16>, vector<72x512xbf16>, vector<4x512xf32> -> vector<4x512xf32>
    %c0_16 = arith.constant 0 : index
    %c0_17 = arith.constant 0 : index
    %93 = vector.load %arg4[%c0_16, %c0_17] : memref<4x72xbf16, #tpu.memory_space<vmem>>, vector<4x72xbf16>
    %cst_18 = arith.constant dense<0.000000e+00> : vector<4x512xf32>
    %94 = tpu.matmul %93, %90, %cst_18 {dimension_numbers = #tpu.dot_dimension_numbers<[1], [0], [0], [1], [0, 0, 1, 1], [], []>} : vector<4x72xbf16>, vector<72x512xbf16>, vector<4x512xf32> -> vector<4x512xf32>
    %c0_19 = arith.constant 0 : index
    %c0_20 = arith.constant 0 : index
    %95 = vector.load %arg8[%c0_19, %c0_20] : memref<8x2xf32, #tpu.memory_space<vmem>>, vector<4x1xf32>
    %96 = vector.broadcast %95 : vector<4x1xf32> to vector<4x512xf32>
    %97 = arith.mulf %92, %96 : vector<4x512xf32>
    %c0_21 = arith.constant 0 : index
    %c1_22 = arith.constant 1 : index
    %98 = vector.load %arg8[%c0_21, %c1_22] : memref<8x2xf32, #tpu.memory_space<vmem>>, vector<4x1xf32>
    %99 = vector.broadcast %98 : vector<4x1xf32> to vector<4x512xf32>
    %100 = arith.addf %97, %99 : vector<4x512xf32>
    %cst_23 = arith.constant 0.000000e+00 : f32
    %101 = vector.broadcast %cst_23 : f32 to vector<4x512xf32>
    %102 = arith.maximumf %100, %101 : vector<4x512xf32>
    %c4 = arith.constant 4 : index
    %c0_24 = arith.constant 0 : index
    %103 = vector.load %arg8[%c4, %c0_24] : memref<8x2xf32, #tpu.memory_space<vmem>>, vector<4x1xf32>
    %104 = vector.broadcast %103 : vector<4x1xf32> to vector<4x512xf32>
    %105 = arith.mulf %94, %104 : vector<4x512xf32>
    %c4_25 = arith.constant 4 : index
    %c1_26 = arith.constant 1 : index
    %106 = vector.load %arg8[%c4_25, %c1_26] : memref<8x2xf32, #tpu.memory_space<vmem>>, vector<4x1xf32>
    %107 = vector.broadcast %106 : vector<4x1xf32> to vector<4x512xf32>
    %108 = arith.addf %105, %107 : vector<4x512xf32>
    %cst_27 = arith.constant 0.000000e+00 : f32
    %109 = vector.broadcast %cst_27 : f32 to vector<4x512xf32>
    %110 = arith.maximumf %108, %109 : vector<4x512xf32>
    %c0_28 = arith.constant 0 : index
    %c0_29 = arith.constant 0 : index
    %111 = vector.load %arg5[%c0_28, %c0_29] : memref<32x4xbf16, #tpu.memory_space<vmem>>, vector<32x4xbf16>
    %112 = arith.truncf %102 : vector<4x512xf32> to vector<4x512xbf16>
    %cst_30 = arith.constant dense<0.000000e+00> : vector<32x512xf32>
    %113 = tpu.matmul %111, %112, %cst_30 {dimension_numbers = #tpu.dot_dimension_numbers<[1], [0], [0], [1], [0, 0, 1, 1], [], []>} : vector<32x4xbf16>, vector<4x512xbf16>, vector<32x512xf32> -> vector<32x512xf32>
    %c0_31 = arith.constant 0 : index
    %c0_32 = arith.constant 0 : index
    %114 = vector.load %arg6[%c0_31, %c0_32] : memref<32x4xbf16, #tpu.memory_space<vmem>>, vector<32x4xbf16>
    %115 = arith.truncf %110 : vector<4x512xf32> to vector<4x512xbf16>
    %cst_33 = arith.constant dense<0.000000e+00> : vector<32x512xf32>
    %116 = tpu.matmul %114, %115, %cst_33 {dimension_numbers = #tpu.dot_dimension_numbers<[1], [0], [0], [1], [0, 0, 1, 1], [], []>} : vector<32x4xbf16>, vector<4x512xbf16>, vector<32x512xf32> -> vector<32x512xf32>
    %117 = arith.addf %113, %116 : vector<32x512xf32>
    %c0_34 = arith.constant 0 : index
    %c0_35 = arith.constant 0 : index
    %118 = vector.load %arg9[%c0_34, %c0_35] : memref<32x2xf32, #tpu.memory_space<vmem>>, vector<32x1xf32>
    %119 = vector.broadcast %118 : vector<32x1xf32> to vector<32x512xf32>
    %120 = arith.mulf %117, %119 : vector<32x512xf32>
    %c0_36 = arith.constant 0 : index
    %c1_37 = arith.constant 1 : index
    %121 = vector.load %arg9[%c0_36, %c1_37] : memref<32x2xf32, #tpu.memory_space<vmem>>, vector<32x1xf32>
    %122 = vector.broadcast %121 : vector<32x1xf32> to vector<32x512xf32>
    %123 = arith.addf %120, %122 : vector<32x512xf32>
    %124 = arith.addf %123, %4 : vector<32x512xf32>
    %cst_38 = arith.constant 0.000000e+00 : f32
    %125 = vector.broadcast %cst_38 : f32 to vector<32x512xf32>
    %126 = arith.maximumf %124, %125 : vector<32x512xf32>
    %127 = vector.extract_strided_slice %126 {offsets = [0, 0], sizes = [32, 256], strides = [1, 1]} : vector<32x512xf32> to vector<32x256xf32>
    %c0_39 = arith.constant 0 : index
    %c0_40 = arith.constant 0 : index
    %c0_41 = arith.constant 0 : index
    %128 = vector.load %arg11[%c0_39, %c0_40, %c0_41] : memref<2x32x256xf32, #tpu.memory_space<vmem>>, vector<1x32x256xf32>
    %129 = vector.shape_cast %128 : vector<1x32x256xf32> to vector<32x256xf32>
    %130 = vector.shape_cast %127 : vector<32x256xf32> to vector<1x32x256xf32>
    tpu.vector_store %arg11[%c0_39, %c0_40, %c0_41], %130 {strides = array<i32>} : memref<2x32x256xf32, #tpu.memory_space<vmem>>, vector<1x32x256xf32>,
    %131 = vector.extract_strided_slice %126 {offsets = [0, 256], sizes = [32, 256], strides = [1, 1]} : vector<32x512xf32> to vector<32x256xf32>
    %c1_42 = arith.constant 1 : index
    %c0_43 = arith.constant 0 : index
    %c0_44 = arith.constant 0 : index
    %132 = vector.load %arg11[%c1_42, %c0_43, %c0_44] : memref<2x32x256xf32, #tpu.memory_space<vmem>>, vector<1x32x256xf32>
    %133 = vector.shape_cast %132 : vector<1x32x256xf32> to vector<32x256xf32>
    %134 = vector.shape_cast %131 : vector<32x256xf32> to vector<1x32x256xf32>
    tpu.vector_store %arg11[%c1_42, %c0_43, %c0_44], %134 {strides = array<i32>} : memref<2x32x256xf32, #tpu.memory_space<vmem>>, vector<1x32x256xf32>,
    return
  }
  func.func @transform_0(%arg0: i32) -> (i32, i32, i32) {
    %c0_i32 = arith.constant 0 : i32
    %c0_i32_0 = arith.constant 0 : i32
    %c0_i32_1 = arith.constant 0 : i32
    return %arg0, %c0_i32, %c0_i32_0 : i32, i32, i32
  }
  func.func @transform_1(%arg0: i32) -> (i32, i32) {
    %c0_i32 = arith.constant 0 : i32
    %c0_i32_0 = arith.constant 0 : i32
    %c0_i32_1 = arith.constant 0 : i32
    return %c0_i32, %c0_i32_0 : i32, i32
  }
  func.func @transform_2(%arg0: i32) -> (i32, i32) {
    %c0_i32 = arith.constant 0 : i32
    %c0_i32_0 = arith.constant 0 : i32
    %c0_i32_1 = arith.constant 0 : i32
    return %c0_i32, %c0_i32_0 : i32, i32
  }
  func.func @transform_3(%arg0: i32) -> (i32, i32) {
    %c0_i32 = arith.constant 0 : i32
    %c0_i32_0 = arith.constant 0 : i32
    %c0_i32_1 = arith.constant 0 : i32
    return %c0_i32, %c0_i32_0 : i32, i32
  }
  func.func @transform_4(%arg0: i32) -> (i32, i32) {
    %c0_i32 = arith.constant 0 : i32
    %c0_i32_0 = arith.constant 0 : i32
    %c0_i32_1 = arith.constant 0 : i32
    return %c0_i32, %c0_i32_0 : i32, i32
  }
  func.func @transform_5(%arg0: i32) -> (i32, i32) {
    %c0_i32 = arith.constant 0 : i32
    %c0_i32_0 = arith.constant 0 : i32
    %c0_i32_1 = arith.constant 0 : i32
    return %c0_i32, %c0_i32_0 : i32, i32
  }
  func.func @transform_6(%arg0: i32) -> (i32, i32) {
    %c0_i32 = arith.constant 0 : i32
    %c0_i32_0 = arith.constant 0 : i32
    %c0_i32_1 = arith.constant 0 : i32
    return %c0_i32, %c0_i32_0 : i32, i32
  }
  func.func @transform_7(%arg0: i32) -> (i32, i32) {
    %c0_i32 = arith.constant 0 : i32
    %c0_i32_0 = arith.constant 0 : i32
    %c0_i32_1 = arith.constant 0 : i32
    return %c0_i32, %c0_i32_0 : i32, i32
  }
  func.func @transform_8(%arg0: i32) -> (i32, i32) {
    %c0_i32 = arith.constant 0 : i32
    %c0_i32_0 = arith.constant 0 : i32
    %c0_i32_1 = arith.constant 0 : i32
    return %c0_i32, %c0_i32_0 : i32, i32
  }
  func.func @transform_9(%arg0: i32) -> (i32, i32) {
    %c0_i32 = arith.constant 0 : i32
    %c0_i32_0 = arith.constant 0 : i32
    %c0_i32_1 = arith.constant 0 : i32
    return %c0_i32, %c0_i32_0 : i32, i32
  }
  func.func @transform_10(%arg0: i32) -> (i32, i32, i32) {
    %c0_i32 = arith.constant 0 : i32
    %c0_i32_0 = arith.constant 0 : i32
    %c0_i32_1 = arith.constant 0 : i32
    return %arg0, %c0_i32, %c0_i32_0 : i32, i32, i32
  }
}

</mosaic_0001>

<llo_original>
// kernel: bottleneck_forward.1
$region0: #{bottleneck_forward.1}
  #allocation0 [shape = 'u32[]', space=smem, size = 0x4, offset = 0x4, fixed_abs, tag = 'smem constant byte address 0x4 - core index']
  #allocation1 [shape = 'u32[144,128]{1,0:T(1,128)}', space=vmem, size = 0x12000, scoped, tag = 'internal scratch']
  %s0 = inlined_call_operand.vmem [shape: f32[4,32,256], index: 0, kind: input, shape index: {}]
  %s1 = inlined_call_operand.vmem [shape: bf16[8,32], index: 1, kind: input, shape index: {}]
  %s2 = inlined_call_operand.vmem [shape: bf16[4,72], index: 2, kind: input, shape index: {}]
  %s3 = inlined_call_operand.vmem [shape: bf16[4,72], index: 3, kind: input, shape index: {}]
  %s4 = inlined_call_operand.vmem [shape: bf16[32,4], index: 4, kind: input, shape index: {}]
  %s5 = inlined_call_operand.vmem [shape: bf16[32,4], index: 5, kind: input, shape index: {}]
  %s6 = inlined_call_operand.vmem [shape: f32[8,2], index: 6, kind: input, shape index: {}]
  %s7 = inlined_call_operand.vmem [shape: f32[8,2], index: 7, kind: input, shape index: {}]
  %s8 = inlined_call_operand.vmem [shape: f32[32,2], index: 8, kind: input, shape index: {}]
  %s9 = inlined_call_operand.vmem [shape: f32[18,512], index: 9, kind: input, shape index: {}]
  %s10 = inlined_call_operand.vmem [shape: f32[4,32,256], index: 10, kind: output, shape index: {}]
  %s11 = sld [smem:[#allocation0]]
  $region73: #{bottleneck_forward.1} parent=0
    _
  %s13 = ssub.s32 1, %s11
  %s14 = scalar_select 0, %s13, %s11
  loop: start=0, step=1, limit=4
  $region2: #{bottleneck_forward.1} parent=0 // loop_pre_header
    _
  $region3: #{bottleneck_forward.1} parent=0 // loop_header
    %s16 = sphi 0, %s20
    %p17 = scmp.ge.s32.totalorder %s16, 4
    %s26 = sphi 0, %s28
    %s29 = sphi 0, %s26
    %s30 = sphi 0, %s29
    %s46 = sphi 0, %s30
    %s50 = sphi 0, %s50
    %s52 = sphi 0, %s50
    %s53 = sphi 0, %s52
    %s67 = sphi 0, %s53
    %s71 = sphi 0, %s71
    %s73 = sphi 0, %s71
    %s74 = sphi 0, %s73
    %s88 = sphi 0, %s74
    %s92 = sphi 0, %s92
    %s94 = sphi 0, %s92
    %s95 = sphi 0, %s94
    %s109 = sphi 0, %s95
    %s113 = sphi 0, %s113
    %s115 = sphi 0, %s113
    %s116 = sphi 0, %s115
    %s130 = sphi 0, %s116
    %s134 = sphi 0, %s134
    %s136 = sphi 0, %s134
    %s137 = sphi 0, %s136
    %s151 = sphi 0, %s137
    %s155 = sphi 0, %s155
    %s157 = sphi 0, %s155
    %s158 = sphi 0, %s157
    %s172 = sphi 0, %s158
    %s176 = sphi 0, %s176
    %s178 = sphi 0, %s176
    %s179 = sphi 0, %s178
    %s193 = sphi 0, %s179
    %s197 = sphi 0, %s197
    %s199 = sphi 0, %s197
    %s200 = sphi 0, %s199
    %s214 = sphi 0, %s200
    %s218 = sphi 0, %s218
    %s220 = sphi 0, %s218
    %s221 = sphi 0, %s220
    %s235 = sphi 0, %s221
    %s241 = sphi 0, %s243
    %s244 = sphi 0, %s241
    %s245 = sphi 0, %s244
    %s261 = sphi 0, %s245
  $region4: #{bottleneck_forward.1} parent=0 // loop_header_branch
    %19 = sbr.rel (%p17) target = $region8
  $region5: #{bottleneck_forward.1} parent=0 // loop_body
    %s21 = ssub.s32 %s16, 1
    %s22 = ssub.s32 %s16, 2
    %s23 = sadd.s32 %s16, 1
    %s24 = ssub.s32 %s16, %s23
    %p25 = scmp.eq.s32.totalorder %s24, 0
    %s27 = sadd.s32 %s26, 1
    %s28 = scalar_select %p25, %s26, %s27
    %p31 = pneg %p25
    %p32 = scmp.eq.s32.totalorder %s16, 1
    %p33 = por %p31, %p32
    %p34 = scmp.ne.s32.totalorder %s26, %s29
    %p35 = scmp.eq.s32.totalorder %s16, 0
    %p36 = por %p34, %p35
    %p37 = scmp.ne.s32.totalorder %s26, %s29
    %p38 = scmp.eq.s32.totalorder %s21, 1
    %p39 = por %p37, %p38
    %p40 = scmp.ne.s32.totalorder %s29, %s30
    %p41 = scmp.eq.s32.totalorder %s21, 0
    %p42 = por %p40, %p41
    %p43 = scmp.ne.s32.totalorder %s29, %s30
    %p44 = scmp.eq.s32.totalorder %s22, 1
    %p45 = por %p43, %p44
    %p47 = scmp.ne.s32.totalorder %s30, %s46
    %p48 = scmp.eq.s32.totalorder %s22, 0
    %p49 = por %p47, %p48
    %s51 = sadd.s32 %s50, 1
    %p54 = scmp.eq.s32.totalorder %s16, 1
    %p55 = scmp.ne.s32.totalorder %s50, %s52
    %p56 = scmp.eq.s32.totalorder %s16, 0
    %p57 = por %p55, %p56
    %p58 = scmp.ne.s32.totalorder %s50, %s52
    %p59 = scmp.eq.s32.totalorder %s21, 1
    %p60 = por %p58, %p59
    %p61 = scmp.ne.s32.totalorder %s52, %s53
    %p62 = scmp.eq.s32.totalorder %s21, 0
    %p63 = por %p61, %p62
    %p64 = scmp.ne.s32.totalorder %s52, %s53
    %p65 = scmp.eq.s32.totalorder %s22, 1
    %p66 = por %p64, %p65
    %p68 = scmp.ne.s32.totalorder %s53, %s67
    %p69 = scmp.eq.s32.totalorder %s22, 0
    %p70 = por %p68, %p69
    %s72 = sadd.s32 %s71, 1
    %p75 = scmp.eq.s32.totalorder %s16, 1
    %p76 = scmp.ne.s32.totalorder %s71, %s73
    %p77 = scmp.eq.s32.totalorder %s16, 0
    %p78 = por %p76, %p77
    %p79 = scmp.ne.s32.totalorder %s71, %s73
    %p80 = scmp.eq.s32.totalorder %s21, 1
    %p81 = por %p79, %p80
    %p82 = scmp.ne.s32.totalorder %s73, %s74
    %p83 = scmp.eq.s32.totalorder %s21, 0
    %p84 = por %p82, %p83
    %p85 = scmp.ne.s32.totalorder %s73, %s74
    %p86 = scmp.eq.s32.totalorder %s22, 1
    %p87 = por %p85, %p86
    %p89 = scmp.ne.s32.totalorder %s74, %s88
    %p90 = scmp.eq.s32.totalorder %s22, 0
    %p91 = por %p89, %p90
    %s93 = sadd.s32 %s92, 1
    %p96 = scmp.eq.s32.totalorder %s16, 1
    %p97 = scmp.ne.s32.totalorder %s92, %s94
    %p98 = scmp.eq.s32.totalorder %s16, 0
    %p99 = por %p97, %p98
    %p100 = scmp.ne.s32.totalorder %s92, %s94
    %p101 = scmp.eq.s32.totalorder %s21, 1
    %p102 = por %p100, %p101
    %p103 = scmp.ne.s32.totalorder %s94, %s95
    %p104 = scmp.eq.s32.totalorder %s21, 0
    %p105 = por %p103, %p104
    %p106 = scmp.ne.s32.totalorder %s94, %s95
    %p107 = scmp.eq.s32.totalorder %s22, 1
    %p108 = por %p106, %p107
    %p110 = scmp.ne.s32.totalorder %s95, %s109
    %p111 = scmp.eq.s32.totalorder %s22, 0
    %p112 = por %p110, %p111
    %s114 = sadd.s32 %s113, 1
    %p117 = scmp.eq.s32.totalorder %s16, 1
    %p118 = scmp.ne.s32.totalorder %s113, %s115
    %p119 = scmp.eq.s32.totalorder %s16, 0
    %p120 = por %p118, %p119
    %p121 = scmp.ne.s32.totalorder %s113, %s115
    %p122 = scmp.eq.s32.totalorder %s21, 1
    %p123 = por %p121, %p122
    %p124 = scmp.ne.s32.totalorder %s115, %s116
    %p125 = scmp.eq.s32.totalorder %s21, 0
    %p126 = por %p124, %p125
    %p127 = scmp.ne.s32.totalorder %s115, %s116
    %p128 = scmp.eq.s32.totalorder %s22, 1
    %p129 = por %p127, %p128
    %p131 = scmp.ne.s32.totalorder %s116, %s130
    %p132 = scmp.eq.s32.totalorder %s22, 0
    %p133 = por %p131, %p132
    %s135 = sadd.s32 %s134, 1
    %p138 = scmp.eq.s32.totalorder %s16, 1
    %p139 = scmp.ne.s32.totalorder %s134, %s136
    %p140 = scmp.eq.s32.totalorder %s16, 0
    %p141 = por %p139, %p140
    %p142 = scmp.ne.s32.totalorder %s134, %s136
    %p143 = scmp.eq.s32.totalorder %s21, 1
    %p144 = por %p142, %p143
    %p145 = scmp.ne.s32.totalorder %s136, %s137
    %p146 = scmp.eq.s32.totalorder %s21, 0
    %p147 = por %p145, %p146
    %p148 = scmp.ne.s32.totalorder %s136, %s137
    %p149 = scmp.eq.s32.totalorder %s22, 1
    %p150 = por %p148, %p149
    %p152 = scmp.ne.s32.totalorder %s137, %s151
    %p153 = scmp.eq.s32.totalorder %s22, 0
    %p154 = por %p152, %p153
    %s156 = sadd.s32 %s155, 1
    %p159 = scmp.eq.s32.totalorder %s16, 1
    %p160 = scmp.ne.s32.totalorder %s155, %s157
    %p161 = scmp.eq.s32.totalorder %s16, 0
    %p162 = por %p160, %p161
    %p163 = scmp.ne.s32.totalorder %s155, %s157
    %p164 = scmp.eq.s32.totalorder %s21, 1
    %p165 = por %p163, %p164
    %p166 = scmp.ne.s32.totalorder %s157, %s158
    %p167 = scmp.eq.s32.totalorder %s21, 0
    %p168 = por %p166, %p167
    %p169 = scmp.ne.s32.totalorder %s157, %s158
    %p170 = scmp.eq.s32.totalorder %s22, 1
    %p171 = por %p169, %p170
    %p173 = scmp.ne.s32.totalorder %s158, %s172
    %p174 = scmp.eq.s32.totalorder %s22, 0
    %p175 = por %p173, %p174
    %s177 = sadd.s32 %s176, 1
    %p180 = scmp.eq.s32.totalorder %s16, 1
    %p181 = scmp.ne.s32.totalorder %s176, %s178
    %p182 = scmp.eq.s32.totalorder %s16, 0
    %p183 = por %p181, %p182
    %p184 = scmp.ne.s32.totalorder %s176, %s178
    %p185 = scmp.eq.s32.totalorder %s21, 1
    %p186 = por %p184, %p185
    %p187 = scmp.ne.s32.totalorder %s178, %s179
    %p188 = scmp.eq.s32.totalorder %s21, 0
    %p189 = por %p187, %p188
    %p190 = scmp.ne.s32.totalorder %s178, %s179
    %p191 = scmp.eq.s32.totalorder %s22, 1
    %p192 = por %p190, %p191
    %p194 = scmp.ne.s32.totalorder %s179, %s193
    %p195 = scmp.eq.s32.totalorder %s22, 0
    %p196 = por %p194, %p195
    %s198 = sadd.s32 %s197, 1
    %p201 = scmp.eq.s32.totalorder %s16, 1
    %p202 = scmp.ne.s32.totalorder %s197, %s199
    %p203 = scmp.eq.s32.totalorder %s16, 0
    %p204 = por %p202, %p203
    %p205 = scmp.ne.s32.totalorder %s197, %s199
    %p206 = scmp.eq.s32.totalorder %s21, 1
    %p207 = por %p205, %p206
    %p208 = scmp.ne.s32.totalorder %s199, %s200
    %p209 = scmp.eq.s32.totalorder %s21, 0
    %p210 = por %p208, %p209
    %p211 = scmp.ne.s32.totalorder %s199, %s200
    %p212 = scmp.eq.s32.totalorder %s22, 1
    %p213 = por %p211, %p212
    %p215 = scmp.ne.s32.totalorder %s200, %s214
    %p216 = scmp.eq.s32.totalorder %s22, 0
    %p217 = por %p215, %p216
    %s219 = sadd.s32 %s218, 1
    %p222 = scmp.eq.s32.totalorder %s16, 1
    %p223 = scmp.ne.s32.totalorder %s218, %s220
    %p224 = scmp.eq.s32.totalorder %s16, 0
    %p225 = por %p223, %p224
    %p226 = scmp.ne.s32.totalorder %s218, %s220
    %p227 = scmp.eq.s32.totalorder %s21, 1
    %p228 = por %p226, %p227
    %p229 = scmp.ne.s32.totalorder %s220, %s221
    %p230 = scmp.eq.s32.totalorder %s21, 0
    %p231 = por %p229, %p230
    %p232 = scmp.ne.s32.totalorder %s220, %s221
    %p233 = scmp.eq.s32.totalorder %s22, 1
    %p234 = por %p232, %p233
    %p236 = scmp.ne.s32.totalorder %s221, %s235
    %p237 = scmp.eq.s32.totalorder %s22, 0
    %p238 = por %p236, %p237
    %s239 = ssub.s32 %s16, %s23
    %p240 = scmp.eq.s32.totalorder %s239, 0
    %s242 = sadd.s32 %s241, 1
    %s243 = scalar_select %p240, %s241, %s242
    %p246 = pneg %p240
    %p247 = scmp.eq.s32.totalorder %s16, 1
    %p248 = por %p246, %p247
    %p249 = scmp.ne.s32.totalorder %s241, %s244
    %p250 = scmp.eq.s32.totalorder %s16, 0
    %p251 = por %p249, %p250
    %p252 = scmp.ne.s32.totalorder %s241, %s244
    %p253 = scmp.eq.s32.totalorder %s21, 1
    %p254 = por %p252, %p253
    %p255 = scmp.ne.s32.totalorder %s244, %s245
    %p256 = scmp.eq.s32.totalorder %s21, 0
    %p257 = por %p255, %p256
    %p258 = scmp.ne.s32.totalorder %s244, %s245
    %p259 = scmp.eq.s32.totalorder %s22, 1
    %p260 = por %p258, %p259
    %p262 = scmp.ne.s32.totalorder %s245, %s261
    %p263 = scmp.eq.s32.totalorder %s22, 0
    %p264 = por %p262, %p263
    %p265 = scmp.le.s32.totalorder 1, %s16
    %p266 = scmp.lt.s32.totalorder %s16, 3
    %p267 = pnand %p265, %p266
    %p268 = pneg %p267
    // Predicated region
    $region9: #{bottleneck_forward.1} parent=5 // pred_check
      _
    $region10: #{bottleneck_forward.1} parent=5 // pred_check_branch
      %270 = sbr.rel (%p267) target = $region12
    $region11: #{bottleneck_forward.1} parent=5 // pred_region
      %s271 = ssub.s32 %s16, 1
      // Predicated region
      $region13: #{bottleneck_forward.1} parent=11 // pred_check
        %p272 = pneg %p63
      $region14: #{bottleneck_forward.1} parent=11 // pred_check_branch
        %274 = sbr.rel (%p272) target = $region16
      $region15: #{bottleneck_forward.1} parent=11 // pred_region
        _
      $region16: #{bottleneck_forward.1} parent=11 // pred_fallthru
        _
      // Predicated region
      $region17: #{bottleneck_forward.1} parent=11 // pred_check
        %p275 = pneg %p84
      $region18: #{bottleneck_forward.1} parent=11 // pred_check_branch
        %277 = sbr.rel (%p275) target = $region20
      $region19: #{bottleneck_forward.1} parent=11 // pred_region
        _
      $region20: #{bottleneck_forward.1} parent=11 // pred_fallthru
        _
      // Predicated region
      $region21: #{bottleneck_forward.1} parent=11 // pred_check
        %p278 = pneg %p105
      $region22: #{bottleneck_forward.1} parent=11 // pred_check_branch
        %280 = sbr.rel (%p278) target = $region24
      $region23: #{bottleneck_forward.1} parent=11 // pred_region
        _
      $region24: #{bottleneck_forward.1} parent=11 // pred_fallthru
        _
      // Predicated region
      $region25: #{bottleneck_forward.1} parent=11 // pred_check
        %p281 = pneg %p126
      $region26: #{bottleneck_forward.1} parent=11 // pred_check_branch
        %283 = sbr.rel (%p281) target = $region28
      $region27: #{bottleneck_forward.1} parent=11 // pred_region
        _
      $region28: #{bottleneck_forward.1} parent=11 // pred_fallthru
        _
      // Predicated region
      $region29: #{bottleneck_forward.1} parent=11 // pred_check
        %p284 = pneg %p147
      $region30: #{bottleneck_forward.1} parent=11 // pred_check_branch
        %286 = sbr.rel (%p284) target = $region32
      $region31: #{bottleneck_forward.1} parent=11 // pred_region
        _
      $region32: #{bottleneck_forward.1} parent=11 // pred_fallthru
        _
      // Predicated region
      $region33: #{bottleneck_forward.1} parent=11 // pred_check
        %p287 = pneg %p168
      $region34: #{bottleneck_forward.1} parent=11 // pred_check_branch
        %289 = sbr.rel (%p287) target = $region36
      $region35: #{bottleneck_forward.1} parent=11 // pred_region
        _
      $region36: #{bottleneck_forward.1} parent=11 // pred_fallthru
        _
      // Predicated region
      $region37: #{bottleneck_forward.1} parent=11 // pred_check
        %p290 = pneg %p189
      $region38: #{bottleneck_forward.1} parent=11 // pred_check_branch
        %292 = sbr.rel (%p290) target = $region40
      $region39: #{bottleneck_forward.1} parent=11 // pred_region
        _
      $region40: #{bottleneck_forward.1} parent=11 // pred_fallthru
        _
      // Predicated region
      $region41: #{bottleneck_forward.1} parent=11 // pred_check
        %p293 = pneg %p210
      $region42: #{bottleneck_forward.1} parent=11 // pred_check_branch
        %295 = sbr.rel (%p293) target = $region44
      $region43: #{bottleneck_forward.1} parent=11 // pred_region
        _
      $region44: #{bottleneck_forward.1} parent=11 // pred_fallthru
        _
      // Predicated region
      $region45: #{bottleneck_forward.1} parent=11 // pred_check
        %p296 = pneg %p231
      $region46: #{bottleneck_forward.1} parent=11 // pred_check_branch
        %298 = sbr.rel (%p296) target = $region48
      $region47: #{bottleneck_forward.1} parent=11 // pred_region
        _
      $region48: #{bottleneck_forward.1} parent=11 // pred_fallthru
        _
    $region12: #{bottleneck_forward.1} parent=5 // pred_fallthru
      _
    %p299 = scmp.lt.s32.totalorder %s16, 2
    // Predicated region
    $region49: #{bottleneck_forward.1} parent=5 // pred_check
      %p300 = pneg %p299
    $region50: #{bottleneck_forward.1} parent=5 // pred_check_branch
      %302 = sbr.rel (%p300) target = $region52
    $region51: #{bottleneck_forward.1} parent=5 // pred_region
      // Predicated region
      $region53: #{bottleneck_forward.1} parent=51 // pred_check
        %p303 = pneg %p36
      $region54: #{bottleneck_forward.1} parent=51 // pred_check_branch
        %305 = sbr.rel (%p303) target = $region56
      $region55: #{bottleneck_forward.1} parent=51 // pred_region
        %s306 = smul.u32 2, %s16
        %p307 = scmp.lt.s32.totalorder %s306, 3
        %s308 = scalar_select %p307, %s306, 3
        %s309 = smul.addr %s308, 8
        %s310 = smul.addr %s309, 8
        %s311 = scalar_lea.vmem %s0, %s310
        %s312 = smul.u32 2, %s16
      $region56: #{bottleneck_forward.1} parent=51 // pred_fallthru
        _
    $region52: #{bottleneck_forward.1} parent=5 // pred_fallthru
      _
    %p313 = scmp.le.s32.totalorder 1, %s16
    %p314 = scmp.lt.s32.totalorder %s16, 3
    %p315 = pnand %p313, %p314
    %p316 = pneg %p315
    // Predicated region
    $region57: #{bottleneck_forward.1} parent=5 // pred_check
      _
    $region58: #{bottleneck_forward.1} parent=5 // pred_check_branch
      %318 = sbr.rel (%p315) target = $region60
    $region59: #{bottleneck_forward.1} parent=5 // pred_region
      %s319 = ssub.s32 %s16, 1
      %s320 = smul.u32 2, %s21
      %p321 = scmp.lt.s32.totalorder %s320, 3
      %s322 = scalar_select %p321, %s320, 3
      %s323 = smul.addr %s322, 8
      %s324 = smul.addr %s323, 8
      %s325 = scalar_lea.vmem %s0, %s324
      %p326 = pneg %p42
      %p327 = pneg %p39
      %p328 = pneg %p63
      %p329 = pneg %p60
      %p330 = pneg %p84
      %p331 = pneg %p81
      %p332 = pneg %p105
      %p333 = pneg %p102
      %p334 = pneg %p126
      %p335 = pneg %p123
      %p336 = pneg %p147
      %p337 = pneg %p144
      %p338 = pneg %p168
      %p339 = pneg %p165
      %p340 = pneg %p189
      %p341 = pneg %p186
      %p342 = pneg %p210
      %p343 = pneg %p207
      %p344 = pneg %p231
      %p345 = pneg %p228
      %p346 = pneg %p257
      %p347 = pneg %p254
      %s348 = smul.u32 2, %s21
      %p349 = scmp.lt.s32.totalorder %s348, 3
      %s350 = scalar_select %p349, %s348, 3
      %s351 = smul.addr %s350, 8
      %s352 = smul.addr %s351, 8
      %s353 = scalar_lea.vmem %s10, %s352
      %s354 = smul.u32 2, %s21
      %p355 = scmp.lt.s32.totalorder %s354, 3
      %s356 = scalar_select %p355, %s354, 3
      %s357 = smul.addr %s356, 8
      %s358 = smul.addr %s357, 8
      %s359 = scalar_lea.vmem %s0, %s358
      %s360 = smul.u32 2, %s21
      %s361 = smul.u32 2, %s21
      %p362 = scmp.lt.s32.totalorder %s361, 3
      %s363 = scalar_select %p362, %s361, 3
      %s364 = smul.addr %s363, 8
      %s365 = smul.addr %s364, 8
      %s366 = scalar_lea.vmem %s10, %s365
      %s367 = smul.u32 2, %s21
      %v369 = vld [vmem:[%s359] sm:$0xff]
      %v370 = vld [vmem:[%s359 + $0x8] sm:$0xff]
      %v371 = vld [vmem:[%s359 + $0x10] sm:$0xff]
      %v372 = vld [vmem:[%s359 + $0x18] sm:$0xff]
      %v373 = vld [vmem:[%s359 + $0x20] sm:$0xff]
      %v374 = vld [vmem:[%s359 + $0x28] sm:$0xff]
      %v375 = vld [vmem:[%s359 + $0x30] sm:$0xff]
      %v376 = vld [vmem:[%s359 + $0x38] sm:$0xff]
      %s377 = scalar_lea.vmem %s359, 64
      %v378 = vld [vmem:[%s377] sm:$0xff]
      %v379 = vld [vmem:[%s377 + $0x8] sm:$0xff]
      %v380 = vld [vmem:[%s377 + $0x10] sm:$0xff]
      %v381 = vld [vmem:[%s377 + $0x18] sm:$0xff]
      %v382 = vld [vmem:[%s377 + $0x20] sm:$0xff]
      %v383 = vld [vmem:[%s377 + $0x28] sm:$0xff]
      %v384 = vld [vmem:[%s377 + $0x30] sm:$0xff]
      %v385 = vld [vmem:[%s377 + $0x38] sm:$0xff]
      %v386 = vld [vmem:[%s1] sm:$0xf]
      %v387 = vpack.c.bf16 %v371, %v369
      %v388 = vpack.c.bf16 %v372, %v370
      %v389 = vpack.c.bf16 %v380, %v378
      %v390 = vpack.c.bf16 %v381, %v379
      %v391 = vpack.c.bf16 %v375, %v373
      %v392 = vpack.c.bf16 %v376, %v374
      %v393 = vpack.c.bf16 %v384, %v382
      %v394 = vpack.c.bf16 %v385, %v383
      %vm395 = vcmask 261120
      %v397 = vsel %vm395, %v386, 0
      %399 = vmatprep.subr.bf16.mxu0 %v388
      %400 = vmatpush1.bf16.msra.mxu0 %v387
      %401 = vmatprep.subr.bf16.mxu0 %v392
      %402 = vmatpush1.bf16.msra.mxu0 %v391
      %403 = vmatprep.subr.bf16.mxu0 0
      %404 = vmatpush1.bf16.msra.mxu0 0
      %405 = vmatprep.subr.bf16.mxu0 0
      %406 = vmatpush1.bf16.msra.mxu0 0
      %407 = vmatprep.subr.bf16.mxu0 0
      %408 = vmatpush1.bf16.msra.mxu0 0
      %409 = vmatprep.subr.bf16.mxu0 0
      %410 = vmatpush1.bf16.msra.mxu0 0
      %411 = vmatprep.subr.bf16.mxu0 0
      %412 = vmatpush1.bf16.msra.mxu0 0
      %413 = vmatprep.subr.bf16.mxu0 0
      %414 = vmatpush1.bf16.msra.mxu0 0
      %415 = vmatprep.subr.bf16.mxu0 0
      %416 = vmatpush1.bf16.msra.mxu0 0
      %417 = vmatprep.subr.bf16.mxu0 0
      %418 = vmatpush1.bf16.msra.mxu0 0
      %419 = vmatprep.subr.bf16.mxu0 0
      %420 = vmatpush1.bf16.msra.mxu0 0
      %421 = vmatprep.subr.bf16.mxu0 0
      %422 = vmatpush1.bf16.msra.mxu0 0
      %423 = vmatprep.subr.bf16.mxu0 0
      %424 = vmatpush1.bf16.msra.mxu0 0
      %425 = vmatprep.subr.bf16.mxu0 0
      %426 = vmatpush1.bf16.msra.mxu0 0
      %427 = vmatprep.subr.bf16.mxu0 0
      %428 = vmatpush1.bf16.msra.mxu0 0
      %429 = vmatprep.subr.bf16.mxu0 0
      %430 = vmatpush1.bf16.msra.mxu0 0
      %431 = vmatprep.mubr.bf16.mxu0 0
      %432 = vmatmul.mubr.bf16.gmra.mrb[0].mxu0 %v397
      %v433 = vpop.f32.mrb[0].mxu0
      %v434 = vadd.f32 0.0, %v433
      %v435 = vpop.f32.mrb[0].mxu0
      %v436 = vadd.f32 0.0, %v435
      %v437 = vpop.f32.mrb[0].mxu0
      %v438 = vpop.f32.mrb[0].mxu0
      %439 = vdwg.mxu0
      %440 = vmatprep.subr.bf16.mxu0 %v390
      %441 = vmatpush1.bf16.msra.mxu0 %v389
      %442 = vmatprep.subr.bf16.mxu0 %v394
      %443 = vmatpush1.bf16.msra.mxu0 %v393
      %444 = vmatprep.subr.bf16.mxu0 0
      %445 = vmatpush1.bf16.msra.mxu0 0
      %446 = vmatprep.subr.bf16.mxu0 0
      %447 = vmatpush1.bf16.msra.mxu0 0
      %448 = vmatprep.subr.bf16.mxu0 0
      %449 = vmatpush1.bf16.msra.mxu0 0
      %450 = vmatprep.subr.bf16.mxu0 0
      %451 = vmatpush1.bf16.msra.mxu0 0
      %452 = vmatprep.subr.bf16.mxu0 0
      %453 = vmatpush1.bf16.msra.mxu0 0
      %454 = vmatprep.subr.bf16.mxu0 0
      %455 = vmatpush1.bf16.msra.mxu0 0
      %456 = vmatprep.subr.bf16.mxu0 0
      %457 = vmatpush1.bf16.msra.mxu0 0
      %458 = vmatprep.subr.bf16.mxu0 0
      %459 = vmatpush1.bf16.msra.mxu0 0
      %460 = vmatprep.subr.bf16.mxu0 0
      %461 = vmatpush1.bf16.msra.mxu0 0
      %462 = vmatprep.subr.bf16.mxu0 0
      %463 = vmatpush1.bf16.msra.mxu0 0
      %464 = vmatprep.subr.bf16.mxu0 0
      %465 = vmatpush1.bf16.msra.mxu0 0
      %466 = vmatprep.subr.bf16.mxu0 0
      %467 = vmatpush1.bf16.msra.mxu0 0
      %468 = vmatprep.subr.bf16.mxu0 0
      %469 = vmatpush1.bf16.msra.mxu0 0
      %470 = vmatprep.subr.bf16.mxu0 0
      %471 = vmatpush1.bf16.msra.mxu0 0
      %472 = vmatprep.mubr.bf16.mxu0 0
      %473 = vmatmul.mubr.bf16.gmra.mrb[0].mxu0 %v397
      %v474 = vpop.f32.mrb[0].mxu0
      %v475 = vadd.f32 0.0, %v474
      %v476 = vpop.f32.mrb[0].mxu0
      %v477 = vadd.f32 0.0, %v476
      %v478 = vpop.f32.mrb[0].mxu0
      %v479 = vpop.f32.mrb[0].mxu0
      %480 = vdwg.mxu0
      %v481 = vld [vmem:[%s6] sm:$0xff]
      %483 = vset.pattern.permute.xlu0 0
      %484 = vperm.xlu0 %483, %v481
      %v485 = vpop.permute.xlu0 %484
      %v487 = vmul.f32 %v434, %v485
      %v488 = vmul.f32 %v436, %v485
      %v489 = vmul.f32 %v475, %v485
      %v490 = vmul.f32 %v477, %v485
      %491 = vset.pattern.permute.xlu0 1
      %492 = vperm.xlu0 %491, %v481
      %v493 = vpop.permute.xlu0 %492
      %v495 = vadd.f32 %v487, %v493
      %v496 = vadd.f32 %v488, %v493
      %v497 = vadd.f32 %v489, %v493
      %v498 = vadd.f32 %v490, %v493
      %v499 = vmax.f32 %v495, 0.0
      %v500 = vmax.f32 %v496, 0.0
      %v501 = vmax.f32 %v497, 0.0
      %v502 = vmax.f32 %v498, 0.0
      %v503 = vld [vmem:[%s9] sm:$0xff]
      %v504 = vld [vmem:[%s9 + $0x8] sm:$0xff]
      %v505 = vld [vmem:[%s9 + $0x10] sm:$0xff]
      %v506 = vld [vmem:[%s9 + $0x18] sm:$0xff]
      %v507 = vld [vmem:[%s9 + $0x20] sm:$0xff]
      %v508 = vld [vmem:[%s9 + $0x28] sm:$0xff]
      %v509 = vld [vmem:[%s9 + $0x30] sm:$0xff]
      %v510 = vld [vmem:[%s9 + $0x38] sm:$0xff]
      %v511 = vld [vmem:[%s9 + $0x40] sm:$0x3]
      %v512 = vld [vmem:[%s9 + $0x48] sm:$0x3]
      %v513 = vld [vmem:[%s9 + $0x50] sm:$0x3]
      %v514 = vld [vmem:[%s9 + $0x58] sm:$0x3]
      %515 = vrot.lane.b32.xlu0 %v499, 68
      %v516 = vpop.permute.xlu0 %515
      %517 = vrot.lane.b32.xlu0 %v500, 68
      %v518 = vpop.permute.xlu0 %517
      %519 = vrot.lane.b32.xlu0 %v501, 68
      %v520 = vpop.permute.xlu0 %519
      %521 = vrot.lane.b32.xlu0 %v502, 68
      %v522 = vpop.permute.xlu0 %521
      %v523 = vlaneseq
      %v524 = vand.u32 %v523, 127
      %vm525 = vcmp.lt.s32.totalorder %v524, 68
      %v526 = vsel %vm525, %v520, %v522
      %v527 = vsel %vm525, %v518, %v520
      %v528 = vsel %vm525, %v516, %v518
      %v529 = vsel %vm525, %v522, %v516
      %v530 = vlaneseq
      %v531 = vshrl.u32 %v530, 7
      %v532 = vsub.s32 0, %v531
      %v533 = vrot.slane %v503, %v532
      %v534 = vlaneseq
      %v535 = vshrl.u32 %v534, 7
      %v536 = vsub.s32 0, %v535
      %v537 = vrot.slane %v504, %v536
      %v538 = vlaneseq
      %v539 = vshrl.u32 %v538, 7
      %v540 = vsub.s32 0, %v539
      %v541 = vrot.slane %v505, %v540
      %v542 = vlaneseq
      %v543 = vshrl.u32 %v542, 7
      %v544 = vsub.s32 0, %v543
      %v545 = vrot.slane %v506, %v544
      %v546 = vmul.f32 %v529, %v533
      %v547 = vmul.f32 %v528, %v537
      %v548 = vmul.f32 %v527, %v541
      %v549 = vmul.f32 %v526, %v545
      %550 = vrot.lane.b32.xlu0 %v499, 64
      %v551 = vpop.permute.xlu0 %550
      %552 = vrot.lane.b32.xlu0 %v500, 64
      %v553 = vpop.permute.xlu0 %552
      %554 = vrot.lane.b32.xlu0 %v501, 64
      %v555 = vpop.permute.xlu0 %554
      %556 = vrot.lane.b32.xlu0 %v502, 64
      %v557 = vpop.permute.xlu0 %556
      %vm558 = vcmp.lt.s32.totalorder %v524, 64
      %v559 = vsel %vm558, %v555, %v557
      %v560 = vsel %vm558, %v553, %v555
      %v561 = vsel %vm558, %v551, %v553
      %v562 = vsel %vm558, %v557, %v551
      %v563 = vlaneseq
      %v564 = vshrl.u32 %v563, 7
      %v565 = vsub.s32 1, %v564
      %v566 = vrot.slane %v503, %v565
      %v567 = vlaneseq
      %v568 = vshrl.u32 %v567, 7
      %v569 = vsub.s32 1, %v568
      %v570 = vrot.slane %v504, %v569
      %v571 = vlaneseq
      %v572 = vshrl.u32 %v571, 7
      %v573 = vsub.s32 1, %v572
      %v574 = vrot.slane %v505, %v573
      %v575 = vlaneseq
      %v576 = vshrl.u32 %v575, 7
      %v577 = vsub.s32 1, %v576
      %v578 = vrot.slane %v506, %v577
      %v579 = vmul.f32 %v562, %v566
      %v580 = vmul.f32 %v561, %v570
      %v581 = vmul.f32 %v560, %v574
      %v582 = vmul.f32 %v559, %v578
      %583 = vrot.lane.b32.xlu0 %v499, 60
      %v584 = vpop.permute.xlu0 %583
      %585 = vrot.lane.b32.xlu0 %v500, 60
      %v586 = vpop.permute.xlu0 %585
      %587 = vrot.lane.b32.xlu0 %v501, 60
      %v588 = vpop.permute.xlu0 %587
      %589 = vrot.lane.b32.xlu0 %v502, 60
      %v590 = vpop.permute.xlu0 %589
      %vm591 = vcmp.lt.s32.totalorder %v524, 60
      %v592 = vsel %vm591, %v588, %v590
      %v593 = vsel %vm591, %v586, %v588
      %v594 = vsel %vm591, %v584, %v586
      %v595 = vsel %vm591, %v590, %v584
      %v596 = vlaneseq
      %v597 = vshrl.u32 %v596, 7
      %v598 = vsub.s32 2, %v597
      %v599 = vrot.slane %v503, %v598
      %v600 = vlaneseq
      %v601 = vshrl.u32 %v600, 7
      %v602 = vsub.s32 2, %v601
      %v603 = vrot.slane %v504, %v602
      %v604 = vlaneseq
      %v605 = vshrl.u32 %v604, 7
      %v606 = vsub.s32 2, %v605
      %v607 = vrot.slane %v505, %v606
      %v608 = vlaneseq
      %v609 = vshrl.u32 %v608, 7
      %v610 = vsub.s32 2, %v609
      %v611 = vrot.slane %v506, %v610
      %v612 = vmul.f32 %v595, %v599
      %v613 = vmul.f32 %v594, %v603
      %v614 = vmul.f32 %v593, %v607
      %v615 = vmul.f32 %v592, %v611
      %616 = vrot.lane.b32.xlu0 %v499, 4
      %v617 = vpop.permute.xlu0 %616
      %618 = vrot.lane.b32.xlu0 %v500, 4
      %v619 = vpop.permute.xlu0 %618
      %620 = vrot.lane.b32.xlu0 %v501, 4
      %v621 = vpop.permute.xlu0 %620
      %622 = vrot.lane.b32.xlu0 %v502, 4
      %v623 = vpop.permute.xlu0 %622
      %vm624 = vcmp.lt.s32.totalorder %v524, 4
      %v625 = vsel %vm624, %v621, %v623
      %v626 = vsel %vm624, %v619, %v621
      %v627 = vsel %vm624, %v617, %v619
      %v628 = vsel %vm624, %v623, %v617
      %v629 = vlaneseq
      %v630 = vshrl.u32 %v629, 7
      %v631 = vsub.s32 3, %v630
      %v632 = vrot.slane %v503, %v631
      %v633 = vlaneseq
      %v634 = vshrl.u32 %v633, 7
      %v635 = vsub.s32 3, %v634
      %v636 = vrot.slane %v504, %v635
      %v637 = vlaneseq
      %v638 = vshrl.u32 %v637, 7
      %v639 = vsub.s32 3, %v638
      %v640 = vrot.slane %v505, %v639
      %v641 = vlaneseq
      %v642 = vshrl.u32 %v641, 7
      %v643 = vsub.s32 3, %v642
      %v644 = vrot.slane %v506, %v643
      %v645 = vmul.f32 %v628, %v632
      %v646 = vmul.f32 %v627, %v636
      %v647 = vmul.f32 %v626, %v640
      %v648 = vmul.f32 %v625, %v644
      %v649 = vlaneseq
      %v650 = vshrl.u32 %v649, 7
      %v651 = vsub.s32 4, %v650
      %v652 = vrot.slane %v503, %v651
      %v653 = vlaneseq
      %v654 = vshrl.u32 %v653, 7
      %v655 = vsub.s32 4, %v654
      %v656 = vrot.slane %v504, %v655
      %v657 = vlaneseq
      %v658 = vshrl.u32 %v657, 7
      %v659 = vsub.s32 4, %v658
      %v660 = vrot.slane %v505, %v659
      %v661 = vlaneseq
      %v662 = vshrl.u32 %v661, 7
      %v663 = vsub.s32 4, %v662
      %v664 = vrot.slane %v506, %v663
      %v665 = vmul.f32 %v499, %v652
      %v666 = vmul.f32 %v500, %v656
      %v667 = vmul.f32 %v501, %v660
      %v668 = vmul.f32 %v502, %v664
      %669 = vrot.lane.b32.xlu0 %v499, 124
      %v670 = vpop.permute.xlu0 %669
      %671 = vrot.lane.b32.xlu0 %v500, 124
      %v672 = vpop.permute.xlu0 %671
      %673 = vrot.lane.b32.xlu0 %v501, 124
      %v674 = vpop.permute.xlu0 %673
      %675 = vrot.lane.b32.xlu0 %v502, 124
      %v676 = vpop.permute.xlu0 %675
      %vm677 = vcmp.lt.s32.totalorder %v524, 124
      %v678 = vsel %vm677, %v674, %v676
      %v679 = vsel %vm677, %v672, %v674
      %v680 = vsel %vm677, %v670, %v672
      %v681 = vsel %vm677, %v676, %v670
      %v682 = vlaneseq
      %v683 = vshrl.u32 %v682, 7
      %v684 = vsub.s32 5, %v683
      %v685 = vrot.slane %v503, %v684
      %v686 = vlaneseq
      %v687 = vshrl.u32 %v686, 7
      %v688 = vsub.s32 5, %v687
      %v689 = vrot.slane %v504, %v688
      %v690 = vlaneseq
      %v691 = vshrl.u32 %v690, 7
      %v692 = vsub.s32 5, %v691
      %v693 = vrot.slane %v505, %v692
      %v694 = vlaneseq
      %v695 = vshrl.u32 %v694, 7
      %v696 = vsub.s32 5, %v695
      %v697 = vrot.slane %v506, %v696
      %v698 = vmul.f32 %v680, %v685
      %v699 = vmul.f32 %v679, %v689
      %v700 = vmul.f32 %v678, %v693
      %v701 = vmul.f32 %v681, %v697
      %v702 = vlaneseq
      %v703 = vshrl.u32 %v702, 7
      %v704 = vsub.s32 6, %v703
      %v705 = vrot.slane %v503, %v704
      %v706 = vlaneseq
      %v707 = vshrl.u32 %v706, 7
      %v708 = vsub.s32 6, %v707
      %v709 = vrot.slane %v504, %v708
      %v710 = vlaneseq
      %v711 = vshrl.u32 %v710, 7
      %v712 = vsub.s32 6, %v711
      %v713 = vrot.slane %v505, %v712
      %v714 = vlaneseq
      %v715 = vshrl.u32 %v714, 7
      %v716 = vsub.s32 6, %v715
      %v717 = vrot.slane %v506, %v716
      %v718 = vmul.f32 %v528, %v705
      %v719 = vmul.f32 %v527, %v709
      %v720 = vmul.f32 %v526, %v713
      %v721 = vmul.f32 %v529, %v717
      %v722 = vlaneseq
      %v723 = vshrl.u32 %v722, 7
      %v724 = vsub.s32 7, %v723
      %v725 = vrot.slane %v503, %v724
      %v726 = vlaneseq
      %v727 = vshrl.u32 %v726, 7
      %v728 = vsub.s32 7, %v727
      %v729 = vrot.slane %v504, %v728
      %v730 = vlaneseq
      %v731 = vshrl.u32 %v730, 7
      %v732 = vsub.s32 7, %v731
      %v733 = vrot.slane %v505, %v732
      %v734 = vlaneseq
      %v735 = vshrl.u32 %v734, 7
      %v736 = vsub.s32 7, %v735
      %v737 = vrot.slane %v506, %v736
      %v738 = vmul.f32 %v561, %v725
      %v739 = vmul.f32 %v560, %v729
      %v740 = vmul.f32 %v559, %v733
      %v741 = vmul.f32 %v562, %v737
      %v742 = vlaneseq
      %v743 = vshrl.u32 %v742, 7
      %v744 = vsub.s32 0, %v743
      %v745 = vrot.slane %v507, %v744
      %v746 = vlaneseq
      %v747 = vshrl.u32 %v746, 7
      %v748 = vsub.s32 0, %v747
      %v749 = vrot.slane %v508, %v748
      %v750 = vlaneseq
      %v751 = vshrl.u32 %v750, 7
      %v752 = vsub.s32 0, %v751
      %v753 = vrot.slane %v509, %v752
      %v754 = vlaneseq
      %v755 = vshrl.u32 %v754, 7
      %v756 = vsub.s32 0, %v755
      %v757 = vrot.slane %v510, %v756
      %v758 = vmul.f32 %v594, %v745
      %v759 = vmul.f32 %v593, %v749
      %v760 = vmul.f32 %v592, %v753
      %v761 = vmul.f32 %v595, %v757
      %v762 = vpack.c.bf16 %v579, %v546
      %v763 = vpack.c.bf16 %v580, %v547
      %v764 = vpack.c.bf16 %v581, %v548
      %v765 = vpack.c.bf16 %v582, %v549
      %v766 = vpack.c.bf16 %v645, %v612
      %v767 = vpack.c.bf16 %v646, %v613
      %v768 = vpack.c.bf16 %v647, %v614
      %v769 = vpack.c.bf16 %v648, %v615
      %v770 = vpack.c.bf16 %v698, %v665
      %v771 = vpack.c.bf16 %v699, %v666
      %v772 = vpack.c.bf16 %v700, %v667
      %v773 = vpack.c.bf16 %v701, %v668
      %v774 = vpack.c.bf16 %v738, %v718
      %v775 = vpack.c.bf16 %v739, %v719
      %v776 = vpack.c.bf16 %v740, %v720
      %v777 = vpack.c.bf16 %v741, %v721
      %v778 = vpack.c.bf16 %v758, %v758
      %v779 = vpack.c.bf16 %v759, %v759
      %v780 = vpack.c.bf16 %v760, %v760
      %v781 = vpack.c.bf16 %v761, %v761
      %782 = vrot.lane.b32.xlu0 %v499, 17
      %v783 = vpop.permute.xlu0 %782
      %784 = vrot.lane.b32.xlu0 %v500, 17
      %v785 = vpop.permute.xlu0 %784
      %786 = vrot.lane.b32.xlu0 %v501, 17
      %v787 = vpop.permute.xlu0 %786
      %788 = vrot.lane.b32.xlu0 %v502, 17
      %v789 = vpop.permute.xlu0 %788
      %vm790 = vcmp.lt.s32.totalorder %v524, 17
      %v791 = vsel %vm790, %v787, %v789
      %v792 = vsel %vm790, %v785, %v787
      %v793 = vsel %vm790, %v783, %v785
      %v794 = vsel %vm790, %v789, %v783
      %v795 = vlaneseq
      %v796 = vshrl.u32 %v795, 7
      %v797 = vsub.s32 1, %v796
      %v798 = vrot.slane %v507, %v797
      %v799 = vlaneseq
      %v800 = vshrl.u32 %v799, 7
      %v801 = vsub.s32 1, %v800
      %v802 = vrot.slane %v508, %v801
      %v803 = vlaneseq
      %v804 = vshrl.u32 %v803, 7
      %v805 = vsub.s32 1, %v804
      %v806 = vrot.slane %v509, %v805
      %v807 = vlaneseq
      %v808 = vshrl.u32 %v807, 7
      %v809 = vsub.s32 1, %v808
      %v810 = vrot.slane %v510, %v809
      %v811 = vmul.f32 %v794, %v798
      %v812 = vmul.f32 %v793, %v802
      %v813 = vmul.f32 %v792, %v806
      %v814 = vmul.f32 %v791, %v810
      %815 = vrot.lane.b32.xlu0 %v499, 16
      %v816 = vpop.permute.xlu0 %815
      %817 = vrot.lane.b32.xlu0 %v500, 16
      %v818 = vpop.permute.xlu0 %817
      %819 = vrot.lane.b32.xlu0 %v501, 16
      %v820 = vpop.permute.xlu0 %819
      %821 = vrot.lane.b32.xlu0 %v502, 16
      %v822 = vpop.permute.xlu0 %821
      %vm823 = vcmp.lt.s32.totalorder %v524, 16
      %v824 = vsel %vm823, %v820, %v822
      %v825 = vsel %vm823, %v818, %v820
      %v826 = vsel %vm823, %v816, %v818
      %v827 = vsel %vm823, %v822, %v816
      %v828 = vlaneseq
      %v829 = vshrl.u32 %v828, 7
      %v830 = vsub.s32 2, %v829
      %v831 = vrot.slane %v507, %v830
      %v832 = vlaneseq
      %v833 = vshrl.u32 %v832, 7
      %v834 = vsub.s32 2, %v833
      %v835 = vrot.slane %v508, %v834
      %v836 = vlaneseq
      %v837 = vshrl.u32 %v836, 7
      %v838 = vsub.s32 2, %v837
      %v839 = vrot.slane %v509, %v838
      %v840 = vlaneseq
      %v841 = vshrl.u32 %v840, 7
      %v842 = vsub.s32 2, %v841
      %v843 = vrot.slane %v510, %v842
      %v844 = vmul.f32 %v827, %v831
      %v845 = vmul.f32 %v826, %v835
      %v846 = vmul.f32 %v825, %v839
      %v847 = vmul.f32 %v824, %v843
      %848 = vrot.lane.b32.xlu0 %v499, 15
      %v849 = vpop.permute.xlu0 %848
      %850 = vrot.lane.b32.xlu0 %v500, 15
      %v851 = vpop.permute.xlu0 %850
      %852 = vrot.lane.b32.xlu0 %v501, 15
      %v853 = vpop.permute.xlu0 %852
      %854 = vrot.lane.b32.xlu0 %v502, 15
      %v855 = vpop.permute.xlu0 %854
      %vm856 = vcmp.lt.s32.totalorder %v524, 15
      %v857 = vsel %vm856, %v853, %v855
      %v858 = vsel %vm856, %v851, %v853
      %v859 = vsel %vm856, %v849, %v851
      %v860 = vsel %vm856, %v855, %v849
      %v861 = vlaneseq
      %v862 = vshrl.u32 %v861, 7
      %v863 = vsub.s32 3, %v862
      %v864 = vrot.slane %v507, %v863
      %v865 = vlaneseq
      %v866 = vshrl.u32 %v865, 7
      %v867 = vsub.s32 3, %v866
      %v868 = vrot.slane %v508, %v867
      %v869 = vlaneseq
      %v870 = vshrl.u32 %v869, 7
      %v871 = vsub.s32 3, %v870
      %v872 = vrot.slane %v509, %v871
      %v873 = vlaneseq
      %v874 = vshrl.u32 %v873, 7
      %v875 = vsub.s32 3, %v874
      %v876 = vrot.slane %v510, %v875
      %v877 = vmul.f32 %v860, %v864
      %v878 = vmul.f32 %v859, %v868
      %v879 = vmul.f32 %v858, %v872
      %v880 = vmul.f32 %v857, %v876
      %881 = vrot.lane.b32.xlu0 %v499, 1
      %v882 = vpop.permute.xlu0 %881
      %883 = vrot.lane.b32.xlu0 %v500, 1
      %v884 = vpop.permute.xlu0 %883
      %885 = vrot.lane.b32.xlu0 %v501, 1
      %v886 = vpop.permute.xlu0 %885
      %887 = vrot.lane.b32.xlu0 %v502, 1
      %v888 = vpop.permute.xlu0 %887
      %vm889 = vcmp.lt.s32.totalorder %v524, 1
      %v890 = vsel %vm889, %v886, %v888
      %v891 = vsel %vm889, %v884, %v886
      %v892 = vsel %vm889, %v882, %v884
      %v893 = vsel %vm889, %v888, %v882
      %v894 = vlaneseq
      %v895 = vshrl.u32 %v894, 7
      %v896 = vsub.s32 4, %v895
      %v897 = vrot.slane %v507, %v896
      %v898 = vlaneseq
      %v899 = vshrl.u32 %v898, 7
      %v900 = vsub.s32 4, %v899
      %v901 = vrot.slane %v508, %v900
      %v902 = vlaneseq
      %v903 = vshrl.u32 %v902, 7
      %v904 = vsub.s32 4, %v903
      %v905 = vrot.slane %v509, %v904
      %v906 = vlaneseq
      %v907 = vshrl.u32 %v906, 7
      %v908 = vsub.s32 4, %v907
      %v909 = vrot.slane %v510, %v908
      %v910 = vmul.f32 %v893, %v897
      %v911 = vmul.f32 %v892, %v901
      %v912 = vmul.f32 %v891, %v905
      %v913 = vmul.f32 %v890, %v909
      %v914 = vlaneseq
      %v915 = vshrl.u32 %v914, 7
      %v916 = vsub.s32 5, %v915
      %v917 = vrot.slane %v507, %v916
      %v918 = vlaneseq
      %v919 = vshrl.u32 %v918, 7
      %v920 = vsub.s32 5, %v919
      %v921 = vrot.slane %v508, %v920
      %v922 = vlaneseq
      %v923 = vshrl.u32 %v922, 7
      %v924 = vsub.s32 5, %v923
      %v925 = vrot.slane %v509, %v924
      %v926 = vlaneseq
      %v927 = vshrl.u32 %v926, 7
      %v928 = vsub.s32 5, %v927
      %v929 = vrot.slane %v510, %v928
      %v930 = vmul.f32 %v499, %v917
      %v931 = vmul.f32 %v500, %v921
      %v932 = vmul.f32 %v501, %v925
      %v933 = vmul.f32 %v502, %v929
      %934 = vrot.lane.b32.xlu0 %v499, 127
      %v935 = vpop.permute.xlu0 %934
      %936 = vrot.lane.b32.xlu0 %v500, 127
      %v937 = vpop.permute.xlu0 %936
      %938 = vrot.lane.b32.xlu0 %v501, 127
      %v939 = vpop.permute.xlu0 %938
      %940 = vrot.lane.b32.xlu0 %v502, 127
      %v941 = vpop.permute.xlu0 %940
      %vm942 = vcmp.lt.s32.totalorder %v524, 127
      %v943 = vsel %vm942, %v939, %v941
      %v944 = vsel %vm942, %v937, %v939
      %v945 = vsel %vm942, %v935, %v937
      %v946 = vsel %vm942, %v941, %v935
      %v947 = vlaneseq
      %v948 = vshrl.u32 %v947, 7
      %v949 = vsub.s32 6, %v948
      %v950 = vrot.slane %v507, %v949
      %v951 = vlaneseq
      %v952 = vshrl.u32 %v951, 7
      %v953 = vsub.s32 6, %v952
      %v954 = vrot.slane %v508, %v953
      %v955 = vlaneseq
      %v956 = vshrl.u32 %v955, 7
      %v957 = vsub.s32 6, %v956
      %v958 = vrot.slane %v509, %v957
      %v959 = vlaneseq
      %v960 = vshrl.u32 %v959, 7
      %v961 = vsub.s32 6, %v960
      %v962 = vrot.slane %v510, %v961
      %v963 = vmul.f32 %v945, %v950
      %v964 = vmul.f32 %v944, %v954
      %v965 = vmul.f32 %v943, %v958
      %v966 = vmul.f32 %v946, %v962
      %967 = vrot.lane.b32.xlu0 %v499, 113
      %v968 = vpop.permute.xlu0 %967
      %969 = vrot.lane.b32.xlu0 %v500, 113
      %v970 = vpop.permute.xlu0 %969
      %971 = vrot.lane.b32.xlu0 %v501, 113
      %v972 = vpop.permute.xlu0 %971
      %973 = vrot.lane.b32.xlu0 %v502, 113
      %v974 = vpop.permute.xlu0 %973
      %vm975 = vcmp.lt.s32.totalorder %v524, 113
      %v976 = vsel %vm975, %v972, %v974
      %v977 = vsel %vm975, %v970, %v972
      %v978 = vsel %vm975, %v968, %v970
      %v979 = vsel %vm975, %v974, %v968
      %v980 = vlaneseq
      %v981 = vshrl.u32 %v980, 7
      %v982 = vsub.s32 7, %v981
      %v983 = vrot.slane %v507, %v982
      %v984 = vlaneseq
      %v985 = vshrl.u32 %v984, 7
      %v986 = vsub.s32 7, %v985
      %v987 = vrot.slane %v508, %v986
      %v988 = vlaneseq
      %v989 = vshrl.u32 %v988, 7
      %v990 = vsub.s32 7, %v989
      %v991 = vrot.slane %v509, %v990
      %v992 = vlaneseq
      %v993 = vshrl.u32 %v992, 7
      %v994 = vsub.s32 7, %v993
      %v995 = vrot.slane %v510, %v994
      %v996 = vmul.f32 %v978, %v983
      %v997 = vmul.f32 %v977, %v987
      %v998 = vmul.f32 %v976, %v991
      %v999 = vmul.f32 %v979, %v995
      %1000 = vrot.lane.b32.xlu0 %v499, 112
      %v1001 = vpop.permute.xlu0 %1000
      %1002 = vrot.lane.b32.xlu0 %v500, 112
      %v1003 = vpop.permute.xlu0 %1002
      %1004 = vrot.lane.b32.xlu0 %v501, 112
      %v1005 = vpop.permute.xlu0 %1004
      %1006 = vrot.lane.b32.xlu0 %v502, 112
      %v1007 = vpop.permute.xlu0 %1006
      %vm1008 = vcmp.lt.s32.totalorder %v524, 112
      %v1009 = vsel %vm1008, %v1005, %v1007
      %v1010 = vsel %vm1008, %v1003, %v1005
      %v1011 = vsel %vm1008, %v1001, %v1003
      %v1012 = vsel %vm1008, %v1007, %v1001
      %v1013 = vlaneseq
      %v1014 = vshrl.u32 %v1013, 7
      %v1015 = vsub.s32 0, %v1014
      %v1016 = vrot.slane %v511, %v1015
      %v1017 = vlaneseq
      %v1018 = vshrl.u32 %v1017, 7
      %v1019 = vsub.s32 0, %v1018
      %v1020 = vrot.slane %v512, %v1019
      %v1021 = vlaneseq
      %v1022 = vshrl.u32 %v1021, 7
      %v1023 = vsub.s32 0, %v1022
      %v1024 = vrot.slane %v513, %v1023
      %v1025 = vlaneseq
      %v1026 = vshrl.u32 %v1025, 7
      %v1027 = vsub.s32 0, %v1026
      %v1028 = vrot.slane %v514, %v1027
      %v1029 = vmul.f32 %v1011, %v1016
      %v1030 = vmul.f32 %v1010, %v1020
      %v1031 = vmul.f32 %v1009, %v1024
      %v1032 = vmul.f32 %v1012, %v1028
      %1033 = vrot.lane.b32.xlu0 %v499, 111
      %v1034 = vpop.permute.xlu0 %1033
      %1035 = vrot.lane.b32.xlu0 %v500, 111
      %v1036 = vpop.permute.xlu0 %1035
      %1037 = vrot.lane.b32.xlu0 %v501, 111
      %v1038 = vpop.permute.xlu0 %1037
      %1039 = vrot.lane.b32.xlu0 %v502, 111
      %v1040 = vpop.permute.xlu0 %1039
      %vm1041 = vcmp.lt.s32.totalorder %v524, 111
      %v1042 = vsel %vm1041, %v1038, %v1040
      %v1043 = vsel %vm1041, %v1036, %v1038
      %v1044 = vsel %vm1041, %v1034, %v1036
      %v1045 = vsel %vm1041, %v1040, %v1034
      %v1046 = vlaneseq
      %v1047 = vshrl.u32 %v1046, 7
      %v1048 = vsub.s32 1, %v1047
      %v1049 = vrot.slane %v511, %v1048
      %v1050 = vlaneseq
      %v1051 = vshrl.u32 %v1050, 7
      %v1052 = vsub.s32 1, %v1051
      %v1053 = vrot.slane %v512, %v1052
      %v1054 = vlaneseq
      %v1055 = vshrl.u32 %v1054, 7
      %v1056 = vsub.s32 1, %v1055
      %v1057 = vrot.slane %v513, %v1056
      %v1058 = vlaneseq
      %v1059 = vshrl.u32 %v1058, 7
      %v1060 = vsub.s32 1, %v1059
      %v1061 = vrot.slane %v514, %v1060
      %v1062 = vmul.f32 %v1044, %v1049
      %v1063 = vmul.f32 %v1043, %v1053
      %v1064 = vmul.f32 %v1042, %v1057
      %v1065 = vmul.f32 %v1045, %v1061
      %v1066 = vpack.c.bf16 %v844, %v811
      %v1067 = vpack.c.bf16 %v845, %v812
      %v1068 = vpack.c.bf16 %v846, %v813
      %v1069 = vpack.c.bf16 %v847, %v814
      %v1070 = vpack.c.bf16 %v910, %v877
      %v1071 = vpack.c.bf16 %v911, %v878
      %v1072 = vpack.c.bf16 %v912, %v879
      %v1073 = vpack.c.bf16 %v913, %v880
      %v1074 = vpack.c.bf16 %v963, %v930
      %v1075 = vpack.c.bf16 %v964, %v931
      %v1076 = vpack.c.bf16 %v965, %v932
      %v1077 = vpack.c.bf16 %v966, %v933
      %v1078 = vpack.c.bf16 %v1029, %v996
      %v1079 = vpack.c.bf16 %v1030, %v997
      %v1080 = vpack.c.bf16 %v1031, %v998
      %v1081 = vpack.c.bf16 %v1032, %v999
      %v1082 = vpack.c.bf16 %v1062, %v1062
      %v1083 = vpack.c.bf16 %v1063, %v1063
      %v1084 = vpack.c.bf16 %v1064, %v1064
      %v1085 = vpack.c.bf16 %v1065, %v1065
      %v1086 = vld [vmem:[%s2] sm:$0x3]
      %vm1087 = vcmask 588800
      %v1089 = vsel %vm1087, %v1086, 0
      %vm1091 = vcmask 1043456
      %v1093 = vsel %vm1091, %v778, 0
      %v1096 = vsel %vm1091, %v779, 0
      %v1099 = vsel %vm1091, %v780, 0
      %v1102 = vsel %vm1091, %v781, 0
      %1104 = vmatprep.subr.bf16.mxu0 %v763
      %1105 = vmatpush1.bf16.msra.mxu0 %v762
      %1106 = vmatprep.subr.bf16.mxu0 %v767
      %1107 = vmatpush1.bf16.msra.mxu0 %v766
      %1108 = vmatprep.subr.bf16.mxu0 %v771
      %1109 = vmatpush1.bf16.msra.mxu0 %v770
      %1110 = vmatprep.subr.bf16.mxu0 %v775
      %1111 = vmatpush1.bf16.msra.mxu0 %v774
      %1112 = vmatprep.subr.bf16.mxu0 %v1096
      %1113 = vmatpush1.bf16.msra.mxu0 %v1093
      %1114 = vmatprep.subr.bf16.mxu0 0
      %1115 = vmatpush1.bf16.msra.mxu0 0
      %1116 = vmatprep.subr.bf16.mxu0 0
      %1117 = vmatpush1.bf16.msra.mxu0 0
      %1118 = vmatprep.subr.bf16.mxu0 0
      %1119 = vmatpush1.bf16.msra.mxu0 0
      %1120 = vmatprep.subr.bf16.mxu0 0
      %1121 = vmatpush1.bf16.msra.mxu0 0
      %1122 = vmatprep.subr.bf16.mxu0 0
      %1123 = vmatpush1.bf16.msra.mxu0 0
      %1124 = vmatprep.subr.bf16.mxu0 0
      %1125 = vmatpush1.bf16.msra.mxu0 0
      %1126 = vmatprep.subr.bf16.mxu0 0
      %1127 = vmatpush1.bf16.msra.mxu0 0
      %1128 = vmatprep.subr.bf16.mxu0 0
      %1129 = vmatpush1.bf16.msra.mxu0 0
      %1130 = vmatprep.subr.bf16.mxu0 0
      %1131 = vmatpush1.bf16.msra.mxu0 0
      %1132 = vmatprep.subr.bf16.mxu0 0
      %1133 = vmatpush1.bf16.msra.mxu0 0
      %1134 = vmatprep.subr.bf16.mxu0 0
      %1135 = vmatpush1.bf16.msra.mxu0 0
      %1136 = vmatprep.mubr.bf16.mxu0 0
      %1137 = vmatmul.mubr.bf16.gmra.mrb[0].mxu0 %v1089
      %v1138 = vpop.f32.mrb[0].mxu0
      %v1139 = vadd.f32 0.0, %v1138
      %v1140 = vpop.f32.mrb[0].mxu0
      %v1141 = vadd.f32 0.0, %v1140
      %v1142 = vpop.f32.mrb[0].mxu0
      %v1143 = vpop.f32.mrb[0].mxu0
      %1144 = vdwg.mxu0
      %1145 = vmatprep.subr.bf16.mxu0 %v765
      %1146 = vmatpush1.bf16.msra.mxu0 %v764
      %1147 = vmatprep.subr.bf16.mxu0 %v769
      %1148 = vmatpush1.bf16.msra.mxu0 %v768
      %1149 = vmatprep.subr.bf16.mxu0 %v773
      %1150 = vmatpush1.bf16.msra.mxu0 %v772
      %1151 = vmatprep.subr.bf16.mxu0 %v777
      %1152 = vmatpush1.bf16.msra.mxu0 %v776
      %1153 = vmatprep.subr.bf16.mxu0 %v1102
      %1154 = vmatpush1.bf16.msra.mxu0 %v1099
      %1155 = vmatprep.subr.bf16.mxu0 0
      %1156 = vmatpush1.bf16.msra.mxu0 0
      %1157 = vmatprep.subr.bf16.mxu0 0
      %1158 = vmatpush1.bf16.msra.mxu0 0
      %1159 = vmatprep.subr.bf16.mxu0 0
      %1160 = vmatpush1.bf16.msra.mxu0 0
      %1161 = vmatprep.subr.bf16.mxu0 0
      %1162 = vmatpush1.bf16.msra.mxu0 0
      %1163 = vmatprep.subr.bf16.mxu0 0
      %1164 = vmatpush1.bf16.msra.mxu0 0
      %1165 = vmatprep.subr.bf16.mxu0 0
      %1166 = vmatpush1.bf16.msra.mxu0 0
      %1167 = vmatprep.subr.bf16.mxu0 0
      %1168 = vmatpush1.bf16.msra.mxu0 0
      %1169 = vmatprep.subr.bf16.mxu0 0
      %1170 = vmatpush1.bf16.msra.mxu0 0
      %1171 = vmatprep.subr.bf16.mxu0 0
      %1172 = vmatpush1.bf16.msra.mxu0 0
      %1173 = vmatprep.subr.bf16.mxu0 0
      %1174 = vmatpush1.bf16.msra.mxu0 0
      %1175 = vmatprep.subr.bf16.mxu0 0
      %1176 = vmatpush1.bf16.msra.mxu0 0
      %1177 = vmatprep.mubr.bf16.mxu0 0
      %1178 = vmatmul.mubr.bf16.gmra.mrb[0].mxu0 %v1089
      %v1179 = vpop.f32.mrb[0].mxu0
      %v1180 = vadd.f32 0.0, %v1179
      %v1181 = vpop.f32.mrb[0].mxu0
      %v1182 = vadd.f32 0.0, %v1181
      %v1183 = vpop.f32.mrb[0].mxu0
      %v1184 = vpop.f32.mrb[0].mxu0
      %1185 = vdwg.mxu0
      %v1186 = vld [vmem:[%s3] sm:$0x3]
      %v1188 = vsel %vm1087, %v1186, 0
      %v1191 = vsel %vm1091, %v1082, 0
      %v1194 = vsel %vm1091, %v1083, 0
      %v1197 = vsel %vm1091, %v1084, 0
      %v1200 = vsel %vm1091, %v1085, 0
      %1202 = vmatprep.subr.bf16.mxu0 %v1067
      %1203 = vmatpush1.bf16.msra.mxu0 %v1066
      %1204 = vmatprep.subr.bf16.mxu0 %v1071
      %1205 = vmatpush1.bf16.msra.mxu0 %v1070
      %1206 = vmatprep.subr.bf16.mxu0 %v1075
      %1207 = vmatpush1.bf16.msra.mxu0 %v1074
      %1208 = vmatprep.subr.bf16.mxu0 %v1079
      %1209 = vmatpush1.bf16.msra.mxu0 %v1078
      %1210 = vmatprep.subr.bf16.mxu0 %v1194
      %1211 = vmatpush1.bf16.msra.mxu0 %v1191
      %1212 = vmatprep.subr.bf16.mxu0 0
      %1213 = vmatpush1.bf16.msra.mxu0 0
      %1214 = vmatprep.subr.bf16.mxu0 0
      %1215 = vmatpush1.bf16.msra.mxu0 0
      %1216 = vmatprep.subr.bf16.mxu0 0
      %1217 = vmatpush1.bf16.msra.mxu0 0
      %1218 = vmatprep.subr.bf16.mxu0 0
      %1219 = vmatpush1.bf16.msra.mxu0 0
      %1220 = vmatprep.subr.bf16.mxu0 0
      %1221 = vmatpush1.bf16.msra.mxu0 0
      %1222 = vmatprep.subr.bf16.mxu0 0
      %1223 = vmatpush1.bf16.msra.mxu0 0
      %1224 = vmatprep.subr.bf16.mxu0 0
      %1225 = vmatpush1.bf16.msra.mxu0 0
      %1226 = vmatprep.subr.bf16.mxu0 0
      %1227 = vmatpush1.bf16.msra.mxu0 0
      %1228 = vmatprep.subr.bf16.mxu0 0
      %1229 = vmatpush1.bf16.msra.mxu0 0
      %1230 = vmatprep.subr.bf16.mxu0 0
      %1231 = vmatpush1.bf16.msra.mxu0 0
      %1232 = vmatprep.subr.bf16.mxu0 0
      %1233 = vmatpush1.bf16.msra.mxu0 0
      %1234 = vmatprep.mubr.bf16.mxu0 0
      %1235 = vmatmul.mubr.bf16.gmra.mrb[0].mxu0 %v1188
      %v1236 = vpop.f32.mrb[0].mxu0
      %v1237 = vadd.f32 0.0, %v1236
      %v1238 = vpop.f32.mrb[0].mxu0
      %v1239 = vadd.f32 0.0, %v1238
      %v1240 = vpop.f32.mrb[0].mxu0
      %v1241 = vpop.f32.mrb[0].mxu0
      %1242 = vdwg.mxu0
      %1243 = vmatprep.subr.bf16.mxu0 %v1069
      %1244 = vmatpush1.bf16.msra.mxu0 %v1068
      %1245 = vmatprep.subr.bf16.mxu0 %v1073
      %1246 = vmatpush1.bf16.msra.mxu0 %v1072
      %1247 = vmatprep.subr.bf16.mxu0 %v1077
      %1248 = vmatpush1.bf16.msra.mxu0 %v1076
      %1249 = vmatprep.subr.bf16.mxu0 %v1081
      %1250 = vmatpush1.bf16.msra.mxu0 %v1080
      %1251 = vmatprep.subr.bf16.mxu0 %v1200
      %1252 = vmatpush1.bf16.msra.mxu0 %v1197
      %1253 = vmatprep.subr.bf16.mxu0 0
      %1254 = vmatpush1.bf16.msra.mxu0 0
      %1255 = vmatprep.subr.bf16.mxu0 0
      %1256 = vmatpush1.bf16.msra.mxu0 0
      %1257 = vmatprep.subr.bf16.mxu0 0
      %1258 = vmatpush1.bf16.msra.mxu0 0
      %1259 = vmatprep.subr.bf16.mxu0 0
      %1260 = vmatpush1.bf16.msra.mxu0 0
      %1261 = vmatprep.subr.bf16.mxu0 0
      %1262 = vmatpush1.bf16.msra.mxu0 0
      %1263 = vmatprep.subr.bf16.mxu0 0
      %1264 = vmatpush1.bf16.msra.mxu0 0
      %1265 = vmatprep.subr.bf16.mxu0 0
      %1266 = vmatpush1.bf16.msra.mxu0 0
      %1267 = vmatprep.subr.bf16.mxu0 0
      %1268 = vmatpush1.bf16.msra.mxu0 0
      %1269 = vmatprep.subr.bf16.mxu0 0
      %1270 = vmatpush1.bf16.msra.mxu0 0
      %1271 = vmatprep.subr.bf16.mxu0 0
      %1272 = vmatpush1.bf16.msra.mxu0 0
      %1273 = vmatprep.subr.bf16.mxu0 0
      %1274 = vmatpush1.bf16.msra.mxu0 0
      %1275 = vmatprep.mubr.bf16.mxu0 0
      %1276 = vmatmul.mubr.bf16.gmra.mrb[0].mxu0 %v1188
      %v1277 = vpop.f32.mrb[0].mxu0
      %v1278 = vadd.f32 0.0, %v1277
      %v1279 = vpop.f32.mrb[0].mxu0
      %v1280 = vadd.f32 0.0, %v1279
      %v1281 = vpop.f32.mrb[0].mxu0
      %v1282 = vpop.f32.mrb[0].mxu0
      %1283 = vdwg.mxu0
      %v1284 = vld [vmem:[%s7] sm:$0xf]
      %1286 = vset.pattern.permute.xlu0 0
      %1287 = vperm.xlu0 %1286, %v1284
      %v1288 = vpop.permute.xlu0 %1287
      %v1290 = vmul.f32 %v1139, %v1288
      %v1291 = vmul.f32 %v1141, %v1288
      %v1292 = vmul.f32 %v1180, %v1288
      %v1293 = vmul.f32 %v1182, %v1288
      %1294 = vset.pattern.permute.xlu0 1
      %1295 = vperm.xlu0 %1294, %v1284
      %v1296 = vpop.permute.xlu0 %1295
      %v1298 = vadd.f32 %v1290, %v1296
      %v1299 = vadd.f32 %v1291, %v1296
      %v1300 = vadd.f32 %v1292, %v1296
      %v1301 = vadd.f32 %v1293, %v1296
      %v1302 = vmax.f32 %v1298, 0.0
      %v1303 = vmax.f32 %v1299, 0.0
      %v1304 = vmax.f32 %v1300, 0.0
      %v1305 = vmax.f32 %v1301, 0.0
      %v1306 = vld [vmem:[%s7 + $0x4] sm:$0xf]
      %1308 = vset.pattern.permute.xlu0 0
      %1309 = vperm.xlu0 %1308, %v1306
      %v1310 = vpop.permute.xlu0 %1309
      %v1312 = vmul.f32 %v1237, %v1310
      %v1313 = vmul.f32 %v1239, %v1310
      %v1314 = vmul.f32 %v1278, %v1310
      %v1315 = vmul.f32 %v1280, %v1310
      %1316 = vset.pattern.permute.xlu0 1
      %1317 = vperm.xlu0 %1316, %v1306
      %v1318 = vpop.permute.xlu0 %1317
      %v1320 = vadd.f32 %v1312, %v1318
      %v1321 = vadd.f32 %v1313, %v1318
      %v1322 = vadd.f32 %v1314, %v1318
      %v1323 = vadd.f32 %v1315, %v1318
      %v1324 = vmax.f32 %v1320, 0.0
      %v1325 = vmax.f32 %v1321, 0.0
      %v1326 = vmax.f32 %v1322, 0.0
      %v1327 = vmax.f32 %v1323, 0.0
      %v1328 = vld [vmem:[%s4] sm:$0xf]
      %v1329 = vld [vmem:[%s4 + $0x4] sm:$0xf]
      %v1330 = vld [vmem:[%s4 + $0x8] sm:$0xf]
      %v1331 = vld [vmem:[%s4 + $0xc] sm:$0xf]
      %v1332 = vpack.c.bf16 %v1302, %v1302
      %v1333 = vpack.c.bf16 %v1303, %v1303
      %v1334 = vpack.c.bf16 %v1304, %v1304
      %v1335 = vpack.c.bf16 %v1305, %v1305
      %v1336 = vld [vmem:[%s5] sm:$0xf]
      %v1337 = vld [vmem:[%s5 + $0x4] sm:$0xf]
      %v1338 = vld [vmem:[%s5 + $0x8] sm:$0xf]
      %v1339 = vld [vmem:[%s5 + $0xc] sm:$0xf]
      %v1340 = vpack.c.bf16 %v1324, %v1324
      %v1341 = vpack.c.bf16 %v1325, %v1325
      %v1342 = vpack.c.bf16 %v1326, %v1326
      %v1343 = vpack.c.bf16 %v1327, %v1327
      %v1348 = vunpack.c.l.b16 %v1336
      %v1349 = vunpack.c.l.b16 %v1337
      %v1350 = vunpack.c.l.b16 %v1338
      %v1351 = vunpack.c.l.b16 %v1339
      %v1352 = vpack.c.b16 %v1349, %v1348
      %v1353 = vpack.c.b16 %v1351, %v1350
      %vm1354 = vcmask 31744
      %v1356 = vsel %vm1354, %v1352, 0
      %v1359 = vsel %vm1354, %v1353, 0
      %vm1361 = vcmask 1041408
      %v1363 = vsel %vm1361, %v1340, 0
      %v1366 = vsel %vm1361, %v1341, 0
      %v1369 = vsel %vm1361, %v1342, 0
      %v1372 = vsel %vm1361, %v1343, 0
      %1374 = vmatprep.subr.bf16.mxu0 %v1366
      %1375 = vmatpush1.bf16.msra.mxu0 %v1363
      %1376 = vmatprep.subr.bf16.mxu0 0
      %1377 = vmatpush1.bf16.msra.mxu0 0
      %1378 = vmatprep.subr.bf16.mxu0 0
      %1379 = vmatpush1.bf16.msra.mxu0 0
      %1380 = vmatprep.subr.bf16.mxu0 0
      %1381 = vmatpush1.bf16.msra.mxu0 0
      %1382 = vmatprep.subr.bf16.mxu0 0
      %1383 = vmatpush1.bf16.msra.mxu0 0
      %1384 = vmatprep.subr.bf16.mxu0 0
      %1385 = vmatpush1.bf16.msra.mxu0 0
      %1386 = vmatprep.subr.bf16.mxu0 0
      %1387 = vmatpush1.bf16.msra.mxu0 0
      %1388 = vmatprep.subr.bf16.mxu0 0
      %1389 = vmatpush1.bf16.msra.mxu0 0
      %1390 = vmatprep.subr.bf16.mxu0 0
      %1391 = vmatpush1.bf16.msra.mxu0 0
      %1392 = vmatprep.subr.bf16.mxu0 0
      %1393 = vmatpush1.bf16.msra.mxu0 0
      %1394 = vmatprep.subr.bf16.mxu0 0
      %1395 = vmatpush1.bf16.msra.mxu0 0
      %1396 = vmatprep.subr.bf16.mxu0 0
      %1397 = vmatpush1.bf16.msra.mxu0 0
      %1398 = vmatprep.subr.bf16.mxu0 0
      %1399 = vmatpush1.bf16.msra.mxu0 0
      %1400 = vmatprep.subr.bf16.mxu0 0
      %1401 = vmatpush1.bf16.msra.mxu0 0
      %1402 = vmatprep.subr.bf16.mxu0 0
      %1403 = vmatpush1.bf16.msra.mxu0 0
      %1404 = vmatprep.subr.bf16.mxu0 0
      %1405 = vmatpush1.bf16.msra.mxu0 0
      %1406 = vmatprep.mubr.bf16.mxu0 0
      %1407 = vmatmul.mubr.bf16.gmra.mrb[0].mxu0 %v1356
      %v1408 = vpop.f32.mrb[0].mxu0
      %v1409 = vadd.f32 0.0, %v1408
      %v1410 = vpop.f32.mrb[0].mxu0
      %v1411 = vadd.f32 0.0, %v1410
      %v1412 = vpop.f32.mrb[0].mxu0
      %v1413 = vadd.f32 0.0, %v1412
      %v1414 = vpop.f32.mrb[0].mxu0
      %v1415 = vadd.f32 0.0, %v1414
      %1416 = vmatprep.mubr.bf16.mxu0 0
      %1417 = vmatmul.mubr.bf16.gmra.mrb[0].mxu0 %v1359
      %v1418 = vpop.f32.mrb[0].mxu0
      %v1419 = vadd.f32 0.0, %v1418
      %v1420 = vpop.f32.mrb[0].mxu0
      %v1421 = vadd.f32 0.0, %v1420
      %v1422 = vpop.f32.mrb[0].mxu0
      %v1423 = vadd.f32 0.0, %v1422
      %v1424 = vpop.f32.mrb[0].mxu0
      %v1425 = vadd.f32 0.0, %v1424
      %1426 = vdwg.mxu0
      %1427 = vmatprep.subr.bf16.mxu0 %v1372
      %1428 = vmatpush1.bf16.msra.mxu0 %v1369
      %1429 = vmatprep.subr.bf16.mxu0 0
      %1430 = vmatpush1.bf16.msra.mxu0 0
      %1431 = vmatprep.subr.bf16.mxu0 0
      %1432 = vmatpush1.bf16.msra.mxu0 0
      %1433 = vmatprep.subr.bf16.mxu0 0
      %1434 = vmatpush1.bf16.msra.mxu0 0
      %1435 = vmatprep.subr.bf16.mxu0 0
      %1436 = vmatpush1.bf16.msra.mxu0 0
      %1437 = vmatprep.subr.bf16.mxu0 0
      %1438 = vmatpush1.bf16.msra.mxu0 0
      %1439 = vmatprep.subr.bf16.mxu0 0
      %1440 = vmatpush1.bf16.msra.mxu0 0
      %1441 = vmatprep.subr.bf16.mxu0 0
      %1442 = vmatpush1.bf16.msra.mxu0 0
      %1443 = vmatprep.subr.bf16.mxu0 0
      %1444 = vmatpush1.bf16.msra.mxu0 0
      %1445 = vmatprep.subr.bf16.mxu0 0
      %1446 = vmatpush1.bf16.msra.mxu0 0
      %1447 = vmatprep.subr.bf16.mxu0 0
      %1448 = vmatpush1.bf16.msra.mxu0 0
      %1449 = vmatprep.subr.bf16.mxu0 0
      %1450 = vmatpush1.bf16.msra.mxu0 0
      %1451 = vmatprep.subr.bf16.mxu0 0
      %1452 = vmatpush1.bf16.msra.mxu0 0
      %1453 = vmatprep.subr.bf16.mxu0 0
      %1454 = vmatpush1.bf16.msra.mxu0 0
      %1455 = vmatprep.subr.bf16.mxu0 0
      %1456 = vmatpush1.bf16.msra.mxu0 0
      %1457 = vmatprep.subr.bf16.mxu0 0
      %1458 = vmatpush1.bf16.msra.mxu0 0
      %1459 = vmatprep.mubr.bf16.mxu0 0
      %1460 = vmatmul.mubr.bf16.gmra.mrb[0].mxu0 %v1356
      %v1461 = vpop.f32.mrb[0].mxu0
      %v1462 = vadd.f32 0.0, %v1461
      %v1463 = vpop.f32.mrb[0].mxu0
      %v1464 = vadd.f32 0.0, %v1463
      %v1465 = vpop.f32.mrb[0].mxu0
      %v1466 = vadd.f32 0.0, %v1465
      %v1467 = vpop.f32.mrb[0].mxu0
      %v1468 = vadd.f32 0.0, %v1467
      %1469 = vmatprep.mubr.bf16.mxu0 0
      %1470 = vmatmul.mubr.bf16.gmra.mrb[0].mxu0 %v1359
      %v1471 = vpop.f32.mrb[0].mxu0
      %v1472 = vadd.f32 0.0, %v1471
      %v1473 = vpop.f32.mrb[0].mxu0
      %v1474 = vadd.f32 0.0, %v1473
      %v1475 = vpop.f32.mrb[0].mxu0
      %v1476 = vadd.f32 0.0, %v1475
      %v1477 = vpop.f32.mrb[0].mxu0
      %v1478 = vadd.f32 0.0, %v1477
      %1479 = vdwg.mxu0
      %v1484 = vunpack.c.l.b16 %v1328
      %v1485 = vunpack.c.l.b16 %v1329
      %v1486 = vunpack.c.l.b16 %v1330
      %v1487 = vunpack.c.l.b16 %v1331
      %v1488 = vpack.c.b16 %v1485, %v1484
      %v1489 = vpack.c.b16 %v1487, %v1486
      %v1491 = vsel %vm1354, %v1488, 0
      %v1494 = vsel %vm1354, %v1489, 0
      %v1497 = vsel %vm1361, %v1332, 0
      %v1500 = vsel %vm1361, %v1333, 0
      %v1503 = vsel %vm1361, %v1334, 0
      %v1506 = vsel %vm1361, %v1335, 0
      %1508 = vmatprep.subr.bf16.mxu0 %v1500
      %1509 = vmatpush1.bf16.msra.mxu0 %v1497
      %1510 = vmatprep.subr.bf16.mxu0 0
      %1511 = vmatpush1.bf16.msra.mxu0 0
      %1512 = vmatprep.subr.bf16.mxu0 0
      %1513 = vmatpush1.bf16.msra.mxu0 0
      %1514 = vmatprep.subr.bf16.mxu0 0
      %1515 = vmatpush1.bf16.msra.mxu0 0
      %1516 = vmatprep.subr.bf16.mxu0 0
      %1517 = vmatpush1.bf16.msra.mxu0 0
      %1518 = vmatprep.subr.bf16.mxu0 0
      %1519 = vmatpush1.bf16.msra.mxu0 0
      %1520 = vmatprep.subr.bf16.mxu0 0
      %1521 = vmatpush1.bf16.msra.mxu0 0
      %1522 = vmatprep.subr.bf16.mxu0 0
      %1523 = vmatpush1.bf16.msra.mxu0 0
      %1524 = vmatprep.subr.bf16.mxu0 0
      %1525 = vmatpush1.bf16.msra.mxu0 0
      %1526 = vmatprep.subr.bf16.mxu0 0
      %1527 = vmatpush1.bf16.msra.mxu0 0
      %1528 = vmatprep.subr.bf16.mxu0 0
      %1529 = vmatpush1.bf16.msra.mxu0 0
      %1530 = vmatprep.subr.bf16.mxu0 0
      %1531 = vmatpush1.bf16.msra.mxu0 0
      %1532 = vmatprep.subr.bf16.mxu0 0
      %1533 = vmatpush1.bf16.msra.mxu0 0
      %1534 = vmatprep.subr.bf16.mxu0 0
      %1535 = vmatpush1.bf16.msra.mxu0 0
      %1536 = vmatprep.subr.bf16.mxu0 0
      %1537 = vmatpush1.bf16.msra.mxu0 0
      %1538 = vmatprep.subr.bf16.mxu0 0
      %1539 = vmatpush1.bf16.msra.mxu0 0
      %1540 = vmatprep.mubr.bf16.mxu0 0
      %1541 = vmatmul.mubr.bf16.gmra.mrb[0].mxu0 %v1491
      %v1542 = vpop.f32.mrb[0].mxu0
      %v1543 = vadd.f32 %v1409, %v1542
      %v1544 = vpop.f32.mrb[0].mxu0
      %v1545 = vadd.f32 %v1411, %v1544
      %v1546 = vpop.f32.mrb[0].mxu0
      %v1547 = vadd.f32 %v1413, %v1546
      %v1548 = vpop.f32.mrb[0].mxu0
      %v1549 = vadd.f32 %v1415, %v1548
      %1550 = vmatprep.mubr.bf16.mxu0 0
      %1551 = vmatmul.mubr.bf16.gmra.mrb[0].mxu0 %v1494
      %v1552 = vpop.f32.mrb[0].mxu0
      %v1553 = vadd.f32 %v1419, %v1552
      %v1554 = vpop.f32.mrb[0].mxu0
      %v1555 = vadd.f32 %v1421, %v1554
      %v1556 = vpop.f32.mrb[0].mxu0
      %v1557 = vadd.f32 %v1423, %v1556
      %v1558 = vpop.f32.mrb[0].mxu0
      %v1559 = vadd.f32 %v1425, %v1558
      %1560 = vdwg.mxu0
      %1561 = vmatprep.subr.bf16.mxu0 %v1506
      %1562 = vmatpush1.bf16.msra.mxu0 %v1503
      %1563 = vmatprep.subr.bf16.mxu0 0
      %1564 = vmatpush1.bf16.msra.mxu0 0
      %1565 = vmatprep.subr.bf16.mxu0 0
      %1566 = vmatpush1.bf16.msra.mxu0 0
      %1567 = vmatprep.subr.bf16.mxu0 0
      %1568 = vmatpush1.bf16.msra.mxu0 0
      %1569 = vmatprep.subr.bf16.mxu0 0
      %1570 = vmatpush1.bf16.msra.mxu0 0
      %1571 = vmatprep.subr.bf16.mxu0 0
      %1572 = vmatpush1.bf16.msra.mxu0 0
      %1573 = vmatprep.subr.bf16.mxu0 0
      %1574 = vmatpush1.bf16.msra.mxu0 0
      %1575 = vmatprep.subr.bf16.mxu0 0
      %1576 = vmatpush1.bf16.msra.mxu0 0
      %1577 = vmatprep.subr.bf16.mxu0 0
      %1578 = vmatpush1.bf16.msra.mxu0 0
      %1579 = vmatprep.subr.bf16.mxu0 0
      %1580 = vmatpush1.bf16.msra.mxu0 0
      %1581 = vmatprep.subr.bf16.mxu0 0
      %1582 = vmatpush1.bf16.msra.mxu0 0
      %1583 = vmatprep.subr.bf16.mxu0 0
      %1584 = vmatpush1.bf16.msra.mxu0 0
      %1585 = vmatprep.subr.bf16.mxu0 0
      %1586 = vmatpush1.bf16.msra.mxu0 0
      %1587 = vmatprep.subr.bf16.mxu0 0
      %1588 = vmatpush1.bf16.msra.mxu0 0
      %1589 = vmatprep.subr.bf16.mxu0 0
      %1590 = vmatpush1.bf16.msra.mxu0 0
      %1591 = vmatprep.subr.bf16.mxu0 0
      %1592 = vmatpush1.bf16.msra.mxu0 0
      %1593 = vmatprep.mubr.bf16.mxu0 0
      %1594 = vmatmul.mubr.bf16.gmra.mrb[0].mxu0 %v1491
      %v1595 = vpop.f32.mrb[0].mxu0
      %v1596 = vadd.f32 %v1462, %v1595
      %v1597 = vpop.f32.mrb[0].mxu0
      %v1598 = vadd.f32 %v1464, %v1597
      %v1599 = vpop.f32.mrb[0].mxu0
      %v1600 = vadd.f32 %v1466, %v1599
      %v1601 = vpop.f32.mrb[0].mxu0
      %v1602 = vadd.f32 %v1468, %v1601
      %1603 = vmatprep.mubr.bf16.mxu0 0
      %1604 = vmatmul.mubr.bf16.gmra.mrb[0].mxu0 %v1494
      %v1605 = vpop.f32.mrb[0].mxu0
      %v1606 = vadd.f32 %v1472, %v1605
      %v1607 = vpop.f32.mrb[0].mxu0
      %v1608 = vadd.f32 %v1474, %v1607
      %v1609 = vpop.f32.mrb[0].mxu0
      %v1610 = vadd.f32 %v1476, %v1609
      %v1611 = vpop.f32.mrb[0].mxu0
      %v1612 = vadd.f32 %v1478, %v1611
      %1613 = vdwg.mxu0
      %v1614 = vld [vmem:[%s8] sm:$0xff]
      %v1615 = vld [vmem:[%s8 + $0x8] sm:$0xff]
      %v1616 = vld [vmem:[%s8 + $0x10] sm:$0xff]
      %v1617 = vld [vmem:[%s8 + $0x18] sm:$0xff]
      %1619 = vset.pattern.permute.xlu0 0
      %1620 = vperm.xlu0 %1619, %v1614
      %v1621 = vpop.permute.xlu0 %1620
      %1624 = vset.pattern.permute.xlu0 0
      %1625 = vperm.xlu0 %1624, %v1615
      %v1626 = vpop.permute.xlu0 %1625
      %1629 = vset.pattern.permute.xlu0 0
      %1630 = vperm.xlu0 %1629, %v1616
      %v1631 = vpop.permute.xlu0 %1630
      %1634 = vset.pattern.permute.xlu0 0
      %1635 = vperm.xlu0 %1634, %v1617
      %v1636 = vpop.permute.xlu0 %1635
      %v1638 = vmul.f32 %v1543, %v1621
      %v1639 = vmul.f32 %v1545, %v1621
      %v1640 = vmul.f32 %v1596, %v1621
      %v1641 = vmul.f32 %v1598, %v1621
      %v1642 = vmul.f32 %v1547, %v1626
      %v1643 = vmul.f32 %v1549, %v1626
      %v1644 = vmul.f32 %v1600, %v1626
      %v1645 = vmul.f32 %v1602, %v1626
      %v1646 = vmul.f32 %v1553, %v1631
      %v1647 = vmul.f32 %v1555, %v1631
      %v1648 = vmul.f32 %v1606, %v1631
      %v1649 = vmul.f32 %v1608, %v1631
      %v1650 = vmul.f32 %v1557, %v1636
      %v1651 = vmul.f32 %v1559, %v1636
      %v1652 = vmul.f32 %v1610, %v1636
      %v1653 = vmul.f32 %v1612, %v1636
      %1654 = vset.pattern.permute.xlu0 1
      %1655 = vperm.xlu0 %1654, %v1614
      %v1656 = vpop.permute.xlu0 %1655
      %1658 = vset.pattern.permute.xlu0 1
      %1659 = vperm.xlu0 %1658, %v1615
      %v1660 = vpop.permute.xlu0 %1659
      %1662 = vset.pattern.permute.xlu0 1
      %1663 = vperm.xlu0 %1662, %v1616
      %v1664 = vpop.permute.xlu0 %1663
      %1666 = vset.pattern.permute.xlu0 1
      %1667 = vperm.xlu0 %1666, %v1617
      %v1668 = vpop.permute.xlu0 %1667
      %v1670 = vadd.f32 %v1638, %v1656
      %v1671 = vadd.f32 %v1639, %v1656
      %v1672 = vadd.f32 %v1640, %v1656
      %v1673 = vadd.f32 %v1641, %v1656
      %v1674 = vadd.f32 %v1642, %v1660
      %v1675 = vadd.f32 %v1643, %v1660
      %v1676 = vadd.f32 %v1644, %v1660
      %v1677 = vadd.f32 %v1645, %v1660
      %v1678 = vadd.f32 %v1646, %v1664
      %v1679 = vadd.f32 %v1647, %v1664
      %v1680 = vadd.f32 %v1648, %v1664
      %v1681 = vadd.f32 %v1649, %v1664
      %v1682 = vadd.f32 %v1650, %v1668
      %v1683 = vadd.f32 %v1651, %v1668
      %v1684 = vadd.f32 %v1652, %v1668
      %v1685 = vadd.f32 %v1653, %v1668
      %v1686 = vadd.f32 %v1670, %v369
      %v1687 = vadd.f32 %v1671, %v370
      %v1688 = vadd.f32 %v1672, %v378
      %v1689 = vadd.f32 %v1673, %v379
      %v1690 = vadd.f32 %v1674, %v371
      %v1691 = vadd.f32 %v1675, %v372
      %v1692 = vadd.f32 %v1676, %v380
      %v1693 = vadd.f32 %v1677, %v381
      %v1694 = vadd.f32 %v1678, %v373
      %v1695 = vadd.f32 %v1679, %v374
      %v1696 = vadd.f32 %v1680, %v382
      %v1697 = vadd.f32 %v1681, %v383
      %v1698 = vadd.f32 %v1682, %v375
      %v1699 = vadd.f32 %v1683, %v376
      %v1700 = vadd.f32 %v1684, %v384
      %v1701 = vadd.f32 %v1685, %v385
      %v1702 = vmax.f32 %v1686, 0.0
      %v1703 = vmax.f32 %v1687, 0.0
      %v1704 = vmax.f32 %v1688, 0.0
      %v1705 = vmax.f32 %v1689, 0.0
      %v1706 = vmax.f32 %v1690, 0.0
      %v1707 = vmax.f32 %v1691, 0.0
      %v1708 = vmax.f32 %v1692, 0.0
      %v1709 = vmax.f32 %v1693, 0.0
      %v1710 = vmax.f32 %v1694, 0.0
      %v1711 = vmax.f32 %v1695, 0.0
      %v1712 = vmax.f32 %v1696, 0.0
      %v1713 = vmax.f32 %v1697, 0.0
      %v1714 = vmax.f32 %v1698, 0.0
      %v1715 = vmax.f32 %v1699, 0.0
      %v1716 = vmax.f32 %v1700, 0.0
      %v1717 = vmax.f32 %v1701, 0.0
      %1718 = vst [vmem:[%s366] sm:$0xff] %v1702
      %1719 = vst [vmem:[%s366 + $0x8] sm:$0xff] %v1703
      %1720 = vst [vmem:[%s366 + $0x10] sm:$0xff] %v1706
      %1721 = vst [vmem:[%s366 + $0x18] sm:$0xff] %v1707
      %1722 = vst [vmem:[%s366 + $0x20] sm:$0xff] %v1710
      %1723 = vst [vmem:[%s366 + $0x28] sm:$0xff] %v1711
      %1724 = vst [vmem:[%s366 + $0x30] sm:$0xff] %v1714
      %1725 = vst [vmem:[%s366 + $0x38] sm:$0xff] %v1715
      %s1726 = scalar_lea.vmem %s366, 64
      %1727 = vst [vmem:[%s1726] sm:$0xff] %v1704
      %1728 = vst [vmem:[%s1726 + $0x8] sm:$0xff] %v1705
      %1729 = vst [vmem:[%s1726 + $0x10] sm:$0xff] %v1708
      %1730 = vst [vmem:[%s1726 + $0x18] sm:$0xff] %v1709
      %1731 = vst [vmem:[%s1726 + $0x20] sm:$0xff] %v1712
      %1732 = vst [vmem:[%s1726 + $0x28] sm:$0xff] %v1713
      %1733 = vst [vmem:[%s1726 + $0x30] sm:$0xff] %v1716
      %1734 = vst [vmem:[%s1726 + $0x38] sm:$0xff] %v1717
      %s1735 = smul.u32 2, %s21
      %p1736 = scmp.lt.s32.totalorder %s1735, 3
      %s1737 = scalar_select %p1736, %s1735, 3
      %s1738 = smul.addr %s1737, 8
      %s1739 = smul.addr %s1738, 8
      %s1740 = scalar_lea.vmem %s10, %s1739
      // Predicated region
      $region61: #{bottleneck_forward.1} parent=59 // pred_check
        %p1741 = pneg %p254
      $region62: #{bottleneck_forward.1} parent=59 // pred_check_branch
        %1743 = sbr.rel (%p1741) target = $region64
      $region63: #{bottleneck_forward.1} parent=59 // pred_region
        %s1744 = smul.u32 2, %s21
      $region64: #{bottleneck_forward.1} parent=59 // pred_fallthru
        _
    $region60: #{bottleneck_forward.1} parent=5 // pred_fallthru
      _
    %p1745 = scmp.le.s32.totalorder 2, %s16
    // Predicated region
    $region65: #{bottleneck_forward.1} parent=5 // pred_check
      %p1746 = pneg %p1745
    $region66: #{bottleneck_forward.1} parent=5 // pred_check_branch
      %1748 = sbr.rel (%p1746) target = $region68
    $region67: #{bottleneck_forward.1} parent=5 // pred_region
      %s1749 = ssub.s32 %s16, 2
      // Predicated region
      $region69: #{bottleneck_forward.1} parent=67 // pred_check
        %p1750 = pneg %p260
      $region70: #{bottleneck_forward.1} parent=67 // pred_check_branch
        %1752 = sbr.rel (%p1750) target = $region72
      $region71: #{bottleneck_forward.1} parent=67 // pred_region
        %s1753 = smul.u32 2, %s22
        %p1754 = scmp.lt.s32.totalorder %s1753, 3
        %s1755 = scalar_select %p1754, %s1753, 3
        %s1756 = smul.addr %s1755, 8
        %s1757 = smul.addr %s1756, 8
        %s1758 = scalar_lea.vmem %s10, %s1757
      $region72: #{bottleneck_forward.1} parent=67 // pred_fallthru
        _
    $region68: #{bottleneck_forward.1} parent=5 // pred_fallthru
      _
  $region6: #{bottleneck_forward.1} parent=0 // loop_footer
    %s20 = sadd.s32 1, %s16
  $region7: #{bottleneck_forward.1} parent=0 // loop_footer_branch
    %15 = sbr.rel target = $region3
  $region8: #{bottleneck_forward.1} parent=0 // loop_exit
    _

</llo_original>
